<compile_context>
chip_gen: v7x
topology: tpu7x:2x2x1
jax: 0.10.0
libtpu: 0.0.40
codegen_flags: <defaults>
</compile_context>

<pallas_src>
import math
import functools

import jax
import jax.numpy as jnp
from jax import lax
from jax.experimental import pallas as pl
from jax.experimental.pallas import tpu as pltpu


# --------------------------------------------------------------------------
# Kernel
# --------------------------------------------------------------------------
def _mha_flash_kernel(*refs, n_heads, d_k, seq_len, has_mask, compute_dtype):
    """One grid step = (batch b, query block qi, kv block kv); kv innermost.

    Refs (has_mask=True):
      q_ref    (1, tq,  U)   raw query rows for this block (compute dtype)
      k_ref    (1, tkv, U)   projected K chunk (bias already added)
      v_ref    (1, tkv, U)   projected V chunk
      mask_ref (1, tq, tkv)  bf16 {0,1} mask block
      wq_ref   (U, U)        packed per-head WQ, pre-scaled by 1/sqrt(d_k)
      bq_ref   (1, U)        packed bQ*scale (head-0 lanes zeroed), f32
      wout_ref (U, U)
      bout_ref (1, U)
      o_ref    (1, tq, U)
    Scratch:
      qp_sc  (tq, U)  projected Q block (compute dtype)
      m_sc   (tq, H)  per-head running max (f32)
      l_sc   (tq, H)  per-head running sum (f32)
      acc_sc (tq, U)  per-head unnormalized contexts packed along lanes (f32)
    """
    if has_mask:
        (q_ref, k_ref, v_ref, mask_ref, wq_ref, bq_ref, wout_ref, bout_ref,
         o_ref, qp_sc, m_sc, l_sc, acc_sc) = refs
    else:
        (q_ref, k_ref, v_ref, wq_ref, bq_ref, wout_ref, bout_ref,
         o_ref, qp_sc, m_sc, l_sc, acc_sc) = refs
        mask_ref = None

    f32 = jnp.float32
    cd = compute_dtype
    kv = pl.program_id(2)
    tq = q_ref.shape[1]
    tkv = k_ref.shape[1]

    # ---- once per (b, qi): fused Q projection + online-softmax state init --
    @pl.when(kv == 0)
    def _():
        qp = jnp.dot(q_ref[0], wq_ref[...], preferred_element_type=f32)
        qp_sc[...] = (qp + bq_ref[...]).astype(cd)
        m_sc[...] = jnp.full(m_sc.shape, -jnp.inf, f32)
        l_sc[...] = jnp.zeros(l_sc.shape, f32)
        acc_sc[...] = jnp.zeros(acc_sc.shape, f32)

    k_chunk = k_ref[0]                      # (tkv, U)
    v_chunk = v_ref[0]                      # (tkv, U)

    # ---- build "invalid column" predicate (mask and/or OOB tail) -----------
    kv_tail = (seq_len % tkv) != 0          # static
    invalid = None
    if has_mask:
        invalid = mask_ref[0] == 0          # (tq, tkv) bool
    if kv_tail:
        col = kv * tkv + lax.broadcasted_iota(jnp.int32, (tq, tkv), 1)
        oob_col = col >= seq_len
        invalid = oob_col if invalid is None else jnp.logical_or(invalid, oob_col)
        # Zero OOB K/V rows so padded garbage can never poison the matmuls.
        row = kv * tkv + lax.broadcasted_iota(jnp.int32, (tkv, 1), 0)
        row_ok = row < seq_len
        k_chunk = jnp.where(row_ok, k_chunk, jnp.zeros_like(k_chunk))
        v_chunk = jnp.where(row_ok, v_chunk, jnp.zeros_like(v_chunk))

    qp = qp_sc[...]                          # (tq, U) compute dtype

    # ---- per-head online softmax over this KV chunk -------------------------
    for h in range(n_heads):
        lo = h * d_k
        qh = qp[:, lo:lo + d_k]              # (tq,  d_k)
        kh = k_chunk[:, lo:lo + d_k]         # (tkv, d_k)
        vh = v_chunk[:, lo:lo + d_k]         # (tkv, d_k)

        # scores = q k^T / sqrt(d_k)  (scale folded into WQ/bQ); contract last
        # dims directly -- no materialized transpose of K.
        s = lax.dot_general(qh, kh, (((1,), (1,)), ((), ())),
                            preferred_element_type=f32)       # (tq, tkv)
        if invalid is not None:
            s = jnp.where(invalid, -1e9, s)  # exact torch masked_fill value

        m_prev = m_sc[:, h:h + 1]                                   # (tq, 1)
        m_new = jnp.maximum(m_prev, jnp.max(s, axis=-1, keepdims=True))
        alpha = jnp.exp(m_prev - m_new)
        p = jnp.exp(s - m_new)                                      # (tq, tkv)

        l_sc[:, h:h + 1] = alpha * l_sc[:, h:h + 1] + jnp.sum(p, -1, keepdims=True)
        pv = jnp.dot(p.astype(cd), vh, preferred_element_type=f32)  # (tq, d_k)
        acc_sc[:, lo:lo + d_k] = alpha * acc_sc[:, lo:lo + d_k] + pv
        m_sc[:, h:h + 1] = m_new

    # ---- last KV chunk: normalize + fused lane-dense output projection -----
    @pl.when(kv == pl.num_programs(2) - 1)
    def _():
        inv_l = pl.reciprocal(l_sc[...], approx=True)               # (tq, H)
        for h in range(n_heads):
            lo = h * d_k
            acc_sc[:, lo:lo + d_k] = acc_sc[:, lo:lo + d_k] * inv_l[:, h:h + 1]
        ctx = acc_sc[...].astype(cd)                                # (tq, U)
        out = jnp.dot(ctx, wout_ref[...], preferred_element_type=f32) + bout_ref[...]
        o_ref[0] = out.astype(o_ref.dtype)


# --------------------------------------------------------------------------
# Tile / VMEM sizing
# --------------------------------------------------------------------------
def _vmem_budget_bytes():
    try:
        cap = int(pltpu.get_tpu_info().vmem_capacity_bytes)
    except Exception:
        cap = 64 * 1024 * 1024          # conservative fallback (v7x per-TC)
    return max(int(cap * 0.75), 16 * 1024 * 1024)


def _pick_tiles(S, U, cb, has_mask, budget):
    """Pick (tq, tkv).  tq: sublane dim (multiple of 8, or == S).
    tkv is also the mask block's lane dim (multiple of 128, or == S)."""
    def vmem_cost(tq, tkv):
        n = 2 * tq * U * cb             # query block (double-buffered)
        n += 2 * 2 * tkv * U * cb       # projected K + V chunks
        if has_mask:
            n += 2 * tq * tkv * 2       # bf16 mask block
        n += 2 * tq * U * 4             # output block (f32 upper bound)
        n += 2 * 2 * U * U * cb         # WQ + Wout (double-buffered constants)
        n += tq * U * (cb + 4)          # Q-projection + f32 accumulator scratch
        n += 2 * tq * 128 * 4           # m/l scratch (lane padded)
        return n

    tq_cands = [t for t in (512, 256, 128, 64, 32, 16, 8) if t < S]
    if S <= 512:
        tq_cands = [S] + tq_cands
    tkv_cands = [t for t in (2048, 1024, 512, 256, 128) if t < S]
    if S <= 2048:
        tkv_cands = [S] + tkv_cands

    for tq in tq_cands:
        for tkv in tkv_cands:
            if vmem_cost(tq, tkv) <= budget:
                return tq, tkv
    return tq_cands[-1], tkv_cands[-1]


# --------------------------------------------------------------------------
# Wrapper
# --------------------------------------------------------------------------
def multi_headed_attention(query, key, value, params, mask=None,
                           compute_dtype=jnp.bfloat16,
                           q_block=None, kv_block=None):
    """query/key/value: (B, S, U). mask: optional (B, S, S) (0 => masked out).

    q_block / kv_block (optional): override tile sizes.  If < S they must be
    multiples of 8 (q_block) / 128 (kv_block)."""
    B, S, U = query.shape
    H = params['WQ'].shape[0]
    assert U % H == 0
    d_k = U // H
    scale = 1.0 / math.sqrt(d_k)
    out_dtype = query.dtype
    f32 = jnp.float32
    cb = jnp.dtype(compute_dtype).itemsize
    has_mask = mask is not None

    # ---- weight / bias packing (one-time, XLA-side) --------------------------
    def flat(w):                         # (H, U, d_k) -> (U, H*d_k)
        return jnp.transpose(w, (1, 0, 2)).reshape(U, H * d_k)

    def packed_bias(b, s=1.0):           # head 0 gets NO bias (torch loop)
        full = jnp.broadcast_to(b[None, :] * s, (H, d_k))
        return full.at[0].set(0.0).reshape(H * d_k)

    wq = (flat(params['WQ']) * scale).astype(compute_dtype)
    bq = packed_bias(params['bQ'], scale).reshape(1, U).astype(f32)
    wout = params['Wout'].astype(compute_dtype)
    bout = params['bout'].reshape(1, U).astype(f32)

    # ---- K/V projections hoisted out of the kernel (computed once, f32 acc) --
    kp = (key.astype(f32) @ flat(params['WK']) + packed_bias(params['bK']))
    vp = (value.astype(f32) @ flat(params['WV']) + packed_bias(params['bV']))
    kp = kp.astype(compute_dtype)
    vp = vp.astype(compute_dtype)
    qx = query.astype(compute_dtype)

    # ---- tile selection & VMEM budget ----------------------------------------
    budget = _vmem_budget_bytes()
    tq, tkv = _pick_tiles(S, U, cb, has_mask, budget)
    if q_block is not None:
        tq = min(q_block, S)
    if kv_block is not None:
        tkv = min(kv_block, S)
    n_q = pl.cdiv(S, tq)
    n_kv = pl.cdiv(S, tkv)

    kernel = functools.partial(_mha_flash_kernel, n_heads=H, d_k=d_k,
                               seq_len=S, has_mask=has_mask,
                               compute_dtype=compute_dtype)

    in_specs = [
        pl.BlockSpec((1, tq, U), lambda b, qi, kv: (b, qi, 0)),    # raw query
        pl.BlockSpec((1, tkv, U), lambda b, qi, kv: (b, kv, 0)),   # projected K
        pl.BlockSpec((1, tkv, U), lambda b, qi, kv: (b, kv, 0)),   # projected V
    ]
    operands = [qx, kp, vp]
    if has_mask:
        mask_b = (mask != 0).astype(jnp.bfloat16)                  # {0,1} bf16
        in_specs.append(pl.BlockSpec((1, tq, tkv), lambda b, qi, kv: (b, qi, kv)))
        operands.append(mask_b)

    # Constant operands: block index never changes, fetched once per call.
    # TODO(synk): pipeline_mode=pl.Buffered(1) to single-buffer these.
    in_specs += [
        pl.BlockSpec((U, U), lambda b, qi, kv: (0, 0)),            # WQ (scaled)
        pl.BlockSpec((1, U), lambda b, qi, kv: (0, 0)),            # bQ (scaled)
        pl.BlockSpec((U, U), lambda b, qi, kv: (0, 0)),            # Wout
        pl.BlockSpec((1, U), lambda b, qi, kv: (0, 0)),            # bout
    ]
    operands += [wq, bq, wout, bout]

    return pl.pallas_call(
        kernel,
        out_shape=jax.ShapeDtypeStruct((B, S, U), out_dtype),
        grid_spec=pltpu.PrefetchScalarGridSpec(
            num_scalar_prefetch=0,
            grid=(B, n_q, n_kv),
            in_specs=in_specs,
            out_specs=pl.BlockSpec((1, tq, U), lambda b, qi, kv: (b, qi, 0)),
            scratch_shapes=[
                pltpu.VMEM((tq, U), compute_dtype),   # projected Q block
                pltpu.VMEM((tq, H), f32),             # online-softmax max
                pltpu.VMEM((tq, H), f32),             # online-softmax sum
                pltpu.VMEM((tq, U), f32),             # packed ctx accumulator
            ]),
        compiler_params=pltpu.CompilerParams(
            dimension_semantics=("parallel", "parallel", "arbitrary"),
            vmem_limit_bytes=budget),
    )(*operands)


# --------------------------------------------------------------------------
# Pure-JAX reference (exact torch forward, eval mode) + params
# --------------------------------------------------------------------------
def reference_mha(query, key, value, params, mask=None):
    B, S, U = query.shape
    H = params['WQ'].shape[0]
    d_k = U // H
    qs, ks, vs = [], [], []
    for h in range(H):
        bq = 0.0 if h == 0 else params['bQ']
        bk = 0.0 if h == 0 else params['bK']
        bv = 0.0 if h == 0 else params['bV']
        qs.append(query @ params['WQ'][h] + bq)
        ks.append(key @ params['WK'][h] + bk)
        vs.append(value @ params['WV'][h] + bv)
    q = jnp.stack(qs, axis=1)
    k = jnp.stack(ks, axis=1)
    v = jnp.stack(vs, axis=1)
    scores = jnp.einsum('bhsd,bhtd->bhst', q, k) / math.sqrt(d_k)
    if mask is not None:
        scores = jnp.where(mask[:, None, :, :] == 0, -1000000000.0, scores)
    p = jax.nn.softmax(scores, axis=-1)
    x = jnp.einsum('bhst,bhtd->bhsd', p, v)
    x = jnp.transpose(x, (0, 2, 1, 3)).reshape(B, S, H * d_k)
    return x @ params['Wout'] + params['bout']


def init_params(key, n_heads, n_units):
    d_k = n_units // n_heads
    k = math.sqrt(1.0 / n_units)
    keys = jax.random.split(key, 8)
    u = lambda kk, shape: jax.random.uniform(kk, shape, jnp.float32, -k, k)
    return {
        'WQ': u(keys[0], (n_heads, n_units, d_k)),
        'WK': u(keys[1], (n_heads, n_units, d_k)),
        'WV': u(keys[2], (n_heads, n_units, d_k)),
        'Wout': u(keys[3], (n_units, n_units)),
        # torch inits these to zeros; random here to exercise head-0-no-bias.
        'bQ': u(keys[4], (d_k,)),
        'bK': u(keys[5], (d_k,)),
        'bV': u(keys[6], (d_k,)),
        'bout': u(keys[7], (n_units,)),
    }


# --------------------------------------------------------------------------
# Demo / self-test
# --------------------------------------------------------------------------
if __name__ == "__main__":
    B, S, U, H = 2, 16, 32, 4
    root = jax.random.PRNGKey(0)
    kp_, kq, kk, kv_, k2 = jax.random.split(root, 5)

    params = init_params(kp_, H, U)
    query = jax.random.normal(kq, (B, S, U), jnp.float32)
    key_ = jax.random.normal(kk, (B, S, U), jnp.float32)
    value = jax.random.normal(kv_, (B, S, U), jnp.float32)
    mask = jnp.tril(jnp.ones((S, S), jnp.float32))[None].repeat(B, axis=0)

    ref = reference_mha(query, key_, value, params, mask=mask)

    # 1) default (bf16 MXU operands, f32 accumulation), masked.
    out = jax.block_until_ready(
        multi_headed_attention(query, key_, value, params, mask=mask))
    assert out.shape == (B, S, U)
    assert jnp.allclose(out, ref, atol=5e-2, rtol=5e-2), (
        float(jnp.max(jnp.abs(out - ref))))

    # 2) f32 operands, masked -> tight tolerance (approx-reciprocal only).
    out32 = jax.block_until_ready(
        multi_headed_attention(query, key_, value, params, mask=mask,
                               compute_dtype=jnp.float32))
    assert jnp.allclose(out32, ref, atol=2e-3, rtol=2e-3), (
        float(jnp.max(jnp.abs(out32 - ref))))

    # 3) mask=None variant (no mask operand fabricated).
    ref_nm = reference_mha(query, key_, value, params, mask=None)
    out_nm = jax.block_until_ready(
        multi_headed_attention(query, key_, value, params, mask=None,
                               compute_dtype=jnp.float32))
    assert jnp.allclose(out_nm, ref_nm, atol=2e-3, rtol=2e-3), (
        float(jnp.max(jnp.abs(out_nm - ref_nm))))

    # 4) multi-block flash path: several query blocks and KV chunks.
    S2 = 256
    kq2, kk2, kv2 = jax.random.split(k2, 3)
    q2 = jax.random.normal(kq2, (B, S2, U), jnp.float32)
    k2_ = jax.random.normal(kk2, (B, S2, U), jnp.float32)
    v2 = jax.random.normal(kv2, (B, S2, U), jnp.float32)
    m2 = jnp.tril(jnp.ones((S2, S2), jnp.float32))[None].repeat(B, axis=0)
    ref2 = reference_mha(q2, k2_, v2, params, mask=m2)
    out2 = jax.block_until_ready(
        multi_headed_attention(q2, k2_, v2, params, mask=m2,
                               compute_dtype=jnp.float32,
                               q_block=64, kv_block=128))
    assert jnp.allclose(out2, ref2, atol=2e-3, rtol=2e-3), (
        float(jnp.max(jnp.abs(out2 - ref2))))

    # 5) non-divisible S (cdiv grid + in-kernel tail masking).
    S3 = 200
    q3, k3, v3, m3 = (q2[:, :S3], k2_[:, :S3], v2[:, :S3], m2[:, :S3, :S3])
    ref3 = reference_mha(q3, k3, v3, params, mask=m3)
    out3 = jax.block_until_ready(
        multi_headed_attention(q3, k3, v3, params, mask=m3,
                               compute_dtype=jnp.float32,
                               q_block=64, kv_block=128))
    assert jnp.allclose(out3, ref3, atol=2e-3, rtol=2e-3), (
        float(jnp.max(jnp.abs(out3 - ref3))))

    print("KERNEL_OK")
</pallas_src>

<mosaic_0001>
module attributes {stable_mosaic.version = 11 : i64} {
  func.func @_mha_flash_kernel(%arg0: i32, %arg1: i32, %arg2: i32, %arg3: memref<1x16x32xbf16, #tpu.memory_space<vmem>>, %arg4: memref<1x16x32xbf16, #tpu.memory_space<vmem>>, %arg5: memref<1x16x32xbf16, #tpu.memory_space<vmem>>, %arg6: memref<1x16x16xbf16, #tpu.memory_space<vmem>>, %arg7: memref<32x32xbf16, #tpu.memory_space<vmem>>, %arg8: memref<1x32xf32, #tpu.memory_space<vmem>>, %arg9: memref<32x32xbf16, #tpu.memory_space<vmem>>, %arg10: memref<1x32xf32, #tpu.memory_space<vmem>>, %arg11: memref<1x16x32xf32, #tpu.memory_space<vmem>>, %arg12: memref<16x32xbf16, #tpu.memory_space<vmem>>, %arg13: memref<16x4xf32, #tpu.memory_space<vmem>>, %arg14: memref<16x4xf32, #tpu.memory_space<vmem>>, %arg15: memref<16x32xf32, #tpu.memory_space<vmem>>) attributes {dimension_semantics = [#tpu.dimension_semantics<parallel>, #tpu.dimension_semantics<parallel>, #tpu.dimension_semantics<arbitrary>], iteration_bounds = array<i64: 2, 1, 1>, scalar_prefetch = 0 : i64, scratch_operands = 4 : i64, tpu.core_type = #tpu.core_type<tc>, window_params = [{transform_indices = @transform_0, window_bounds = array<i64: 1, 16, 32>}, {transform_indices = @transform_1, window_bounds = array<i64: 1, 16, 32>}, {transform_indices = @transform_2, window_bounds = array<i64: 1, 16, 32>}, {transform_indices = @transform_3, window_bounds = array<i64: 1, 16, 16>}, {pipeline_mode = #tpu.pipeline_mode<synchronous>, transform_indices = @transform_4, window_bounds = array<i64: 32, 32>}, {pipeline_mode = #tpu.pipeline_mode<synchronous>, transform_indices = @transform_5, window_bounds = array<i64: 1, 32>}, {pipeline_mode = #tpu.pipeline_mode<synchronous>, transform_indices = @transform_6, window_bounds = array<i64: 32, 32>}, {pipeline_mode = #tpu.pipeline_mode<synchronous>, transform_indices = @transform_7, window_bounds = array<i64: 1, 32>}, {transform_indices = @transform_8, window_bounds = array<i64: 1, 16, 32>}]} {
    %c0_i32 = arith.constant 0 : i32
    %0 = arith.cmpi eq, %arg2, %c0_i32 : i32
    %1 = arith.extui %0 : i1 to i32
    %c0_i32_0 = arith.constant 0 : i32
    %2 = arith.cmpi ne, %1, %c0_i32_0 : i32
    scf.if %2 {
      %c0_75 = arith.constant 0 : index
      %c0_76 = arith.constant 0 : index
      %c0_77 = arith.constant 0 : index
      %131 = vector.load %arg3[%c0_75, %c0_76, %c0_77] : memref<1x16x32xbf16, #tpu.memory_space<vmem>>, vector<1x16x32xbf16>
      %132 = vector.shape_cast %131 : vector<1x16x32xbf16> to vector<16x32xbf16>
      %c0_78 = arith.constant 0 : index
      %c0_79 = arith.constant 0 : index
      %133 = vector.load %arg7[%c0_78, %c0_79] : memref<32x32xbf16, #tpu.memory_space<vmem>>, vector<32x32xbf16>
      %cst_80 = arith.constant dense<0.000000e+00> : vector<16x32xf32>
      %134 = tpu.matmul %132, %133, %cst_80 {dimension_numbers = #tpu.dot_dimension_numbers<[1], [0], [0], [1], [0, 0, 1, 1], [], []>} : vector<16x32xbf16>, vector<32x32xbf16>, vector<16x32xf32> -> vector<16x32xf32>
      %c0_81 = arith.constant 0 : index
      %c0_82 = arith.constant 0 : index
      %135 = vector.load %arg8[%c0_81, %c0_82] : memref<1x32xf32, #tpu.memory_space<vmem>>, vector<1x32xf32>
      %136 = vector.broadcast %135 : vector<1x32xf32> to vector<16x32xf32>
      %137 = arith.addf %134, %136 : vector<16x32xf32>
      %138 = arith.truncf %137 : vector<16x32xf32> to vector<16x32xbf16>
      %c0_83 = arith.constant 0 : index
      %c0_84 = arith.constant 0 : index
      %139 = vector.load %arg12[%c0_83, %c0_84] : memref<16x32xbf16, #tpu.memory_space<vmem>>, vector<16x32xbf16>
      tpu.vector_store %arg12[%c0_83, %c0_84], %138 {strides = array<i32>} : memref<16x32xbf16, #tpu.memory_space<vmem>>, vector<16x32xbf16>,
      %cst_85 = arith.constant 0xFF800000 : f32
      %140 = vector.broadcast %cst_85 : f32 to vector<16x4xf32>
      %c0_86 = arith.constant 0 : index
      %c0_87 = arith.constant 0 : index
      %141 = vector.load %arg13[%c0_86, %c0_87] : memref<16x4xf32, #tpu.memory_space<vmem>>, vector<16x4xf32>
      tpu.vector_store %arg13[%c0_86, %c0_87], %140 {strides = array<i32>} : memref<16x4xf32, #tpu.memory_space<vmem>>, vector<16x4xf32>,
      %cst_88 = arith.constant 0.000000e+00 : f32
      %142 = vector.broadcast %cst_88 : f32 to vector<16x4xf32>
      %c0_89 = arith.constant 0 : index
      %c0_90 = arith.constant 0 : index
      %143 = vector.load %arg14[%c0_89, %c0_90] : memref<16x4xf32, #tpu.memory_space<vmem>>, vector<16x4xf32>
      tpu.vector_store %arg14[%c0_89, %c0_90], %142 {strides = array<i32>} : memref<16x4xf32, #tpu.memory_space<vmem>>, vector<16x4xf32>,
      %cst_91 = arith.constant 0.000000e+00 : f32
      %144 = vector.broadcast %cst_91 : f32 to vector<16x32xf32>
      %c0_92 = arith.constant 0 : index
      %c0_93 = arith.constant 0 : index
      %145 = vector.load %arg15[%c0_92, %c0_93] : memref<16x32xf32, #tpu.memory_space<vmem>>, vector<16x32xf32>
      tpu.vector_store %arg15[%c0_92, %c0_93], %144 {strides = array<i32>} : memref<16x32xf32, #tpu.memory_space<vmem>>, vector<16x32xf32>,
    } else {
    }
    %c0 = arith.constant 0 : index
    %c0_1 = arith.constant 0 : index
    %c0_2 = arith.constant 0 : index
    %3 = vector.load %arg4[%c0, %c0_1, %c0_2] : memref<1x16x32xbf16, #tpu.memory_space<vmem>>, vector<1x16x32xbf16>
    %4 = vector.shape_cast %3 : vector<1x16x32xbf16> to vector<16x32xbf16>
    %c0_3 = arith.constant 0 : index
    %c0_4 = arith.constant 0 : index
    %c0_5 = arith.constant 0 : index
    %5 = vector.load %arg5[%c0_3, %c0_4, %c0_5] : memref<1x16x32xbf16, #tpu.memory_space<vmem>>, vector<1x16x32xbf16>
    %6 = vector.shape_cast %5 : vector<1x16x32xbf16> to vector<16x32xbf16>
    %c0_6 = arith.constant 0 : index
    %c0_7 = arith.constant 0 : index
    %c0_8 = arith.constant 0 : index
    %7 = vector.load %arg6[%c0_6, %c0_7, %c0_8] : memref<1x16x16xbf16, #tpu.memory_space<vmem>>, vector<1x16x16xbf16>
    %8 = vector.shape_cast %7 : vector<1x16x16xbf16> to vector<16x16xbf16>
    %cst = arith.constant 0.000000e+00 : bf16
    %9 = vector.broadcast %cst : bf16 to vector<16x16xbf16>
    %10 = arith.cmpf oeq, %8, %9 : vector<16x16xbf16>
    %c0_9 = arith.constant 0 : index
    %c0_10 = arith.constant 0 : index
    %11 = vector.load %arg12[%c0_9, %c0_10] : memref<16x32xbf16, #tpu.memory_space<vmem>>, vector<16x32xbf16>
    %12 = vector.extract_strided_slice %11 {offsets = [0, 0], sizes = [16, 8], strides = [1, 1]} : vector<16x32xbf16> to vector<16x8xbf16>
    %13 = vector.extract_strided_slice %4 {offsets = [0, 0], sizes = [16, 8], strides = [1, 1]} : vector<16x32xbf16> to vector<16x8xbf16>
    %14 = vector.extract_strided_slice %6 {offsets = [0, 0], sizes = [16, 8], strides = [1, 1]} : vector<16x32xbf16> to vector<16x8xbf16>
    %cst_11 = arith.constant dense<0.000000e+00> : vector<16x16xf32>
    %15 = tpu.matmul %12, %13, %cst_11 {dimension_numbers = #tpu.dot_dimension_numbers<[1], [1], [0], [0], [0, 0, 1, 0], [], []>} : vector<16x8xbf16>, vector<16x8xbf16>, vector<16x16xf32> -> vector<16x16xf32>
    %cst_12 = arith.constant -1.000000e+09 : f32
    %16 = vector.broadcast %cst_12 : f32 to vector<16x16xf32>
    %17 = arith.select %10, %16, %15 : vector<16x16xi1>, vector<16x16xf32>
    %c0_13 = arith.constant 0 : index
    %c0_14 = arith.constant 0 : index
    %18 = vector.load %arg13[%c0_13, %c0_14] : memref<16x4xf32, #tpu.memory_space<vmem>>, vector<16x1xf32>
    %cst_15 = arith.constant dense<0xFF800000> : vector<16xf32>
    %19 = vector.multi_reduction <maximumf>, %17, %cst_15 [1] : vector<16x16xf32> to vector<16xf32>
    %20 = vector.shape_cast %19 : vector<16xf32> to vector<16x1xf32>
    %21 = arith.maximumf %18, %20 : vector<16x1xf32>
    %22 = arith.subf %18, %21 : vector<16x1xf32>
    %23 = math.exp %22 : vector<16x1xf32>
    %24 = vector.broadcast %21 : vector<16x1xf32> to vector<16x16xf32>
    %25 = arith.subf %17, %24 : vector<16x16xf32>
    %26 = math.exp %25 : vector<16x16xf32>
    %c0_16 = arith.constant 0 : index
    %c0_17 = arith.constant 0 : index
    %27 = vector.load %arg14[%c0_16, %c0_17] : memref<16x4xf32, #tpu.memory_space<vmem>>, vector<16x1xf32>
    %28 = arith.mulf %23, %27 : vector<16x1xf32>
    %cst_18 = arith.constant dense<0.000000e+00> : vector<16xf32>
    %29 = vector.multi_reduction <add>, %26, %cst_18 [1] : vector<16x16xf32> to vector<16xf32>
    %30 = vector.shape_cast %29 : vector<16xf32> to vector<16x1xf32>
    %31 = arith.addf %28, %30 : vector<16x1xf32>
    %c0_19 = arith.constant 0 : index
    %c0_20 = arith.constant 0 : index
    %32 = vector.load %arg14[%c0_19, %c0_20] : memref<16x4xf32, #tpu.memory_space<vmem>>, vector<16x1xf32>
    tpu.vector_store %arg14[%c0_19, %c0_20], %31 {strides = array<i32>} : memref<16x4xf32, #tpu.memory_space<vmem>>, vector<16x1xf32>,
    %33 = arith.truncf %26 : vector<16x16xf32> to vector<16x16xbf16>
    %cst_21 = arith.constant dense<0.000000e+00> : vector<16x8xf32>
    %34 = tpu.matmul %33, %14, %cst_21 {dimension_numbers = #tpu.dot_dimension_numbers<[1], [0], [0], [1], [0, 0, 1, 1], [], []>} : vector<16x16xbf16>, vector<16x8xbf16>, vector<16x8xf32> -> vector<16x8xf32>
    %c0_22 = arith.constant 0 : index
    %c0_23 = arith.constant 0 : index
    %35 = vector.load %arg15[%c0_22, %c0_23] : memref<16x32xf32, #tpu.memory_space<vmem>>, vector<16x8xf32>
    %36 = vector.broadcast %23 : vector<16x1xf32> to vector<16x8xf32>
    %37 = arith.mulf %36, %35 : vector<16x8xf32>
    %38 = arith.addf %37, %34 : vector<16x8xf32>
    %c0_24 = arith.constant 0 : index
    %c0_25 = arith.constant 0 : index
    %39 = vector.load %arg15[%c0_24, %c0_25] : memref<16x32xf32, #tpu.memory_space<vmem>>, vector<16x8xf32>
    tpu.vector_store %arg15[%c0_24, %c0_25], %38 {strides = array<i32>} : memref<16x32xf32, #tpu.memory_space<vmem>>, vector<16x8xf32>,
    %c0_26 = arith.constant 0 : index
    %c0_27 = arith.constant 0 : index
    %40 = vector.load %arg13[%c0_26, %c0_27] : memref<16x4xf32, #tpu.memory_space<vmem>>, vector<16x1xf32>
    tpu.vector_store %arg13[%c0_26, %c0_27], %21 {strides = array<i32>} : memref<16x4xf32, #tpu.memory_space<vmem>>, vector<16x1xf32>,
    %41 = vector.extract_strided_slice %11 {offsets = [0, 8], sizes = [16, 8], strides = [1, 1]} : vector<16x32xbf16> to vector<16x8xbf16>
    %42 = vector.extract_strided_slice %4 {offsets = [0, 8], sizes = [16, 8], strides = [1, 1]} : vector<16x32xbf16> to vector<16x8xbf16>
    %43 = vector.extract_strided_slice %6 {offsets = [0, 8], sizes = [16, 8], strides = [1, 1]} : vector<16x32xbf16> to vector<16x8xbf16>
    %cst_28 = arith.constant dense<0.000000e+00> : vector<16x16xf32>
    %44 = tpu.matmul %41, %42, %cst_28 {dimension_numbers = #tpu.dot_dimension_numbers<[1], [1], [0], [0], [0, 0, 1, 0], [], []>} : vector<16x8xbf16>, vector<16x8xbf16>, vector<16x16xf32> -> vector<16x16xf32>
    %cst_29 = arith.constant -1.000000e+09 : f32
    %45 = vector.broadcast %cst_29 : f32 to vector<16x16xf32>
    %46 = arith.select %10, %45, %44 : vector<16x16xi1>, vector<16x16xf32>
    %c0_30 = arith.constant 0 : index
    %c1 = arith.constant 1 : index
    %47 = vector.load %arg13[%c0_30, %c1] : memref<16x4xf32, #tpu.memory_space<vmem>>, vector<16x1xf32>
    %cst_31 = arith.constant dense<0xFF800000> : vector<16xf32>
    %48 = vector.multi_reduction <maximumf>, %46, %cst_31 [1] : vector<16x16xf32> to vector<16xf32>
    %49 = vector.shape_cast %48 : vector<16xf32> to vector<16x1xf32>
    %50 = arith.maximumf %47, %49 : vector<16x1xf32>
    %51 = arith.subf %47, %50 : vector<16x1xf32>
    %52 = math.exp %51 : vector<16x1xf32>
    %53 = vector.broadcast %50 : vector<16x1xf32> to vector<16x16xf32>
    %54 = arith.subf %46, %53 : vector<16x16xf32>
    %55 = math.exp %54 : vector<16x16xf32>
    %c0_32 = arith.constant 0 : index
    %c1_33 = arith.constant 1 : index
    %56 = vector.load %arg14[%c0_32, %c1_33] : memref<16x4xf32, #tpu.memory_space<vmem>>, vector<16x1xf32>
    %57 = arith.mulf %52, %56 : vector<16x1xf32>
    %cst_34 = arith.constant dense<0.000000e+00> : vector<16xf32>
    %58 = vector.multi_reduction <add>, %55, %cst_34 [1] : vector<16x16xf32> to vector<16xf32>
    %59 = vector.shape_cast %58 : vector<16xf32> to vector<16x1xf32>
    %60 = arith.addf %57, %59 : vector<16x1xf32>
    %c0_35 = arith.constant 0 : index
    %c1_36 = arith.constant 1 : index
    %61 = vector.load %arg14[%c0_35, %c1_36] : memref<16x4xf32, #tpu.memory_space<vmem>>, vector<16x1xf32>
    tpu.vector_store %arg14[%c0_35, %c1_36], %60 {strides = array<i32>} : memref<16x4xf32, #tpu.memory_space<vmem>>, vector<16x1xf32>,
    %62 = arith.truncf %55 : vector<16x16xf32> to vector<16x16xbf16>
    %cst_37 = arith.constant dense<0.000000e+00> : vector<16x8xf32>
    %63 = tpu.matmul %62, %43, %cst_37 {dimension_numbers = #tpu.dot_dimension_numbers<[1], [0], [0], [1], [0, 0, 1, 1], [], []>} : vector<16x16xbf16>, vector<16x8xbf16>, vector<16x8xf32> -> vector<16x8xf32>
    %c0_38 = arith.constant 0 : index
    %c8 = arith.constant 8 : index
    %64 = vector.load %arg15[%c0_38, %c8] : memref<16x32xf32, #tpu.memory_space<vmem>>, vector<16x8xf32>
    %65 = vector.broadcast %52 : vector<16x1xf32> to vector<16x8xf32>
    %66 = arith.mulf %65, %64 : vector<16x8xf32>
    %67 = arith.addf %66, %63 : vector<16x8xf32>
    %c0_39 = arith.constant 0 : index
    %c8_40 = arith.constant 8 : index
    %68 = vector.load %arg15[%c0_39, %c8_40] : memref<16x32xf32, #tpu.memory_space<vmem>>, vector<16x8xf32>
    tpu.vector_store %arg15[%c0_39, %c8_40], %67 {strides = array<i32>} : memref<16x32xf32, #tpu.memory_space<vmem>>, vector<16x8xf32>,
    %c0_41 = arith.constant 0 : index
    %c1_42 = arith.constant 1 : index
    %69 = vector.load %arg13[%c0_41, %c1_42] : memref<16x4xf32, #tpu.memory_space<vmem>>, vector<16x1xf32>
    tpu.vector_store %arg13[%c0_41, %c1_42], %50 {strides = array<i32>} : memref<16x4xf32, #tpu.memory_space<vmem>>, vector<16x1xf32>,
    %70 = vector.extract_strided_slice %11 {offsets = [0, 16], sizes = [16, 8], strides = [1, 1]} : vector<16x32xbf16> to vector<16x8xbf16>
    %71 = vector.extract_strided_slice %4 {offsets = [0, 16], sizes = [16, 8], strides = [1, 1]} : vector<16x32xbf16> to vector<16x8xbf16>
    %72 = vector.extract_strided_slice %6 {offsets = [0, 16], sizes = [16, 8], strides = [1, 1]} : vector<16x32xbf16> to vector<16x8xbf16>
    %cst_43 = arith.constant dense<0.000000e+00> : vector<16x16xf32>
    %73 = tpu.matmul %70, %71, %cst_43 {dimension_numbers = #tpu.dot_dimension_numbers<[1], [1], [0], [0], [0, 0, 1, 0], [], []>} : vector<16x8xbf16>, vector<16x8xbf16>, vector<16x16xf32> -> vector<16x16xf32>
    %cst_44 = arith.constant -1.000000e+09 : f32
    %74 = vector.broadcast %cst_44 : f32 to vector<16x16xf32>
    %75 = arith.select %10, %74, %73 : vector<16x16xi1>, vector<16x16xf32>
    %c0_45 = arith.constant 0 : index
    %c2 = arith.constant 2 : index
    %76 = vector.load %arg13[%c0_45, %c2] : memref<16x4xf32, #tpu.memory_space<vmem>>, vector<16x1xf32>
    %cst_46 = arith.constant dense<0xFF800000> : vector<16xf32>
    %77 = vector.multi_reduction <maximumf>, %75, %cst_46 [1] : vector<16x16xf32> to vector<16xf32>
    %78 = vector.shape_cast %77 : vector<16xf32> to vector<16x1xf32>
    %79 = arith.maximumf %76, %78 : vector<16x1xf32>
    %80 = arith.subf %76, %79 : vector<16x1xf32>
    %81 = math.exp %80 : vector<16x1xf32>
    %82 = vector.broadcast %79 : vector<16x1xf32> to vector<16x16xf32>
    %83 = arith.subf %75, %82 : vector<16x16xf32>
    %84 = math.exp %83 : vector<16x16xf32>
    %c0_47 = arith.constant 0 : index
    %c2_48 = arith.constant 2 : index
    %85 = vector.load %arg14[%c0_47, %c2_48] : memref<16x4xf32, #tpu.memory_space<vmem>>, vector<16x1xf32>
    %86 = arith.mulf %81, %85 : vector<16x1xf32>
    %cst_49 = arith.constant dense<0.000000e+00> : vector<16xf32>
    %87 = vector.multi_reduction <add>, %84, %cst_49 [1] : vector<16x16xf32> to vector<16xf32>
    %88 = vector.shape_cast %87 : vector<16xf32> to vector<16x1xf32>
    %89 = arith.addf %86, %88 : vector<16x1xf32>
    %c0_50 = arith.constant 0 : index
    %c2_51 = arith.constant 2 : index
    %90 = vector.load %arg14[%c0_50, %c2_51] : memref<16x4xf32, #tpu.memory_space<vmem>>, vector<16x1xf32>
    tpu.vector_store %arg14[%c0_50, %c2_51], %89 {strides = array<i32>} : memref<16x4xf32, #tpu.memory_space<vmem>>, vector<16x1xf32>,
    %91 = arith.truncf %84 : vector<16x16xf32> to vector<16x16xbf16>
    %cst_52 = arith.constant dense<0.000000e+00> : vector<16x8xf32>
    %92 = tpu.matmul %91, %72, %cst_52 {dimension_numbers = #tpu.dot_dimension_numbers<[1], [0], [0], [1], [0, 0, 1, 1], [], []>} : vector<16x16xbf16>, vector<16x8xbf16>, vector<16x8xf32> -> vector<16x8xf32>
    %c0_53 = arith.constant 0 : index
    %c16 = arith.constant 16 : index
    %93 = vector.load %arg15[%c0_53, %c16] : memref<16x32xf32, #tpu.memory_space<vmem>>, vector<16x8xf32>
    %94 = vector.broadcast %81 : vector<16x1xf32> to vector<16x8xf32>
    %95 = arith.mulf %94, %93 : vector<16x8xf32>
    %96 = arith.addf %95, %92 : vector<16x8xf32>
    %c0_54 = arith.constant 0 : index
    %c16_55 = arith.constant 16 : index
    %97 = vector.load %arg15[%c0_54, %c16_55] : memref<16x32xf32, #tpu.memory_space<vmem>>, vector<16x8xf32>
    tpu.vector_store %arg15[%c0_54, %c16_55], %96 {strides = array<i32>} : memref<16x32xf32, #tpu.memory_space<vmem>>, vector<16x8xf32>,
    %c0_56 = arith.constant 0 : index
    %c2_57 = arith.constant 2 : index
    %98 = vector.load %arg13[%c0_56, %c2_57] : memref<16x4xf32, #tpu.memory_space<vmem>>, vector<16x1xf32>
    tpu.vector_store %arg13[%c0_56, %c2_57], %79 {strides = array<i32>} : memref<16x4xf32, #tpu.memory_space<vmem>>, vector<16x1xf32>,
    %99 = vector.extract_strided_slice %11 {offsets = [0, 24], sizes = [16, 8], strides = [1, 1]} : vector<16x32xbf16> to vector<16x8xbf16>
    %100 = vector.extract_strided_slice %4 {offsets = [0, 24], sizes = [16, 8], strides = [1, 1]} : vector<16x32xbf16> to vector<16x8xbf16>
    %101 = vector.extract_strided_slice %6 {offsets = [0, 24], sizes = [16, 8], strides = [1, 1]} : vector<16x32xbf16> to vector<16x8xbf16>
    %cst_58 = arith.constant dense<0.000000e+00> : vector<16x16xf32>
    %102 = tpu.matmul %99, %100, %cst_58 {dimension_numbers = #tpu.dot_dimension_numbers<[1], [1], [0], [0], [0, 0, 1, 0], [], []>} : vector<16x8xbf16>, vector<16x8xbf16>, vector<16x16xf32> -> vector<16x16xf32>
    %cst_59 = arith.constant -1.000000e+09 : f32
    %103 = vector.broadcast %cst_59 : f32 to vector<16x16xf32>
    %104 = arith.select %10, %103, %102 : vector<16x16xi1>, vector<16x16xf32>
    %c0_60 = arith.constant 0 : index
    %c3 = arith.constant 3 : index
    %105 = vector.load %arg13[%c0_60, %c3] : memref<16x4xf32, #tpu.memory_space<vmem>>, vector<16x1xf32>
    %cst_61 = arith.constant dense<0xFF800000> : vector<16xf32>
    %106 = vector.multi_reduction <maximumf>, %104, %cst_61 [1] : vector<16x16xf32> to vector<16xf32>
    %107 = vector.shape_cast %106 : vector<16xf32> to vector<16x1xf32>
    %108 = arith.maximumf %105, %107 : vector<16x1xf32>
    %109 = arith.subf %105, %108 : vector<16x1xf32>
    %110 = math.exp %109 : vector<16x1xf32>
    %111 = vector.broadcast %108 : vector<16x1xf32> to vector<16x16xf32>
    %112 = arith.subf %104, %111 : vector<16x16xf32>
    %113 = math.exp %112 : vector<16x16xf32>
    %c0_62 = arith.constant 0 : index
    %c3_63 = arith.constant 3 : index
    %114 = vector.load %arg14[%c0_62, %c3_63] : memref<16x4xf32, #tpu.memory_space<vmem>>, vector<16x1xf32>
    %115 = arith.mulf %110, %114 : vector<16x1xf32>
    %cst_64 = arith.constant dense<0.000000e+00> : vector<16xf32>
    %116 = vector.multi_reduction <add>, %113, %cst_64 [1] : vector<16x16xf32> to vector<16xf32>
    %117 = vector.shape_cast %116 : vector<16xf32> to vector<16x1xf32>
    %118 = arith.addf %115, %117 : vector<16x1xf32>
    %c0_65 = arith.constant 0 : index
    %c3_66 = arith.constant 3 : index
    %119 = vector.load %arg14[%c0_65, %c3_66] : memref<16x4xf32, #tpu.memory_space<vmem>>, vector<16x1xf32>
    tpu.vector_store %arg14[%c0_65, %c3_66], %118 {strides = array<i32>} : memref<16x4xf32, #tpu.memory_space<vmem>>, vector<16x1xf32>,
    %120 = arith.truncf %113 : vector<16x16xf32> to vector<16x16xbf16>
    %cst_67 = arith.constant dense<0.000000e+00> : vector<16x8xf32>
    %121 = tpu.matmul %120, %101, %cst_67 {dimension_numbers = #tpu.dot_dimension_numbers<[1], [0], [0], [1], [0, 0, 1, 1], [], []>} : vector<16x16xbf16>, vector<16x8xbf16>, vector<16x8xf32> -> vector<16x8xf32>
    %c0_68 = arith.constant 0 : index
    %c24 = arith.constant 24 : index
    %122 = vector.load %arg15[%c0_68, %c24] : memref<16x32xf32, #tpu.memory_space<vmem>>, vector<16x8xf32>
    %123 = vector.broadcast %110 : vector<16x1xf32> to vector<16x8xf32>
    %124 = arith.mulf %123, %122 : vector<16x8xf32>
    %125 = arith.addf %124, %121 : vector<16x8xf32>
    %c0_69 = arith.constant 0 : index
    %c24_70 = arith.constant 24 : index
    %126 = vector.load %arg15[%c0_69, %c24_70] : memref<16x32xf32, #tpu.memory_space<vmem>>, vector<16x8xf32>
    tpu.vector_store %arg15[%c0_69, %c24_70], %125 {strides = array<i32>} : memref<16x32xf32, #tpu.memory_space<vmem>>, vector<16x8xf32>,
    %c0_71 = arith.constant 0 : index
    %c3_72 = arith.constant 3 : index
    %127 = vector.load %arg13[%c0_71, %c3_72] : memref<16x4xf32, #tpu.memory_space<vmem>>, vector<16x1xf32>
    tpu.vector_store %arg13[%c0_71, %c3_72], %108 {strides = array<i32>} : memref<16x4xf32, #tpu.memory_space<vmem>>, vector<16x1xf32>,
    %c0_i32_73 = arith.constant 0 : i32
    %128 = arith.cmpi eq, %arg2, %c0_i32_73 : i32
    %129 = arith.extui %128 : i1 to i32
    %c0_i32_74 = arith.constant 0 : i32
    %130 = arith.cmpi ne, %129, %c0_i32_74 : i32
    scf.if %130 {
      %c0_75 = arith.constant 0 : index
      %c0_76 = arith.constant 0 : index
      %131 = vector.load %arg14[%c0_75, %c0_76] : memref<16x4xf32, #tpu.memory_space<vmem>>, vector<16x4xf32>
      %132 = tpu.reciprocal %131 {approx = true} : vector<16x4xf32> -> vector<16x4xf32>
      %c0_77 = arith.constant 0 : index
      %c0_78 = arith.constant 0 : index
      %133 = vector.load %arg15[%c0_77, %c0_78] : memref<16x32xf32, #tpu.memory_space<vmem>>, vector<16x8xf32>
      %134 = vector.extract_strided_slice %132 {offsets = [0, 0], sizes = [16, 1], strides = [1, 1]} : vector<16x4xf32> to vector<16x1xf32>
      %135 = vector.broadcast %134 : vector<16x1xf32> to vector<16x8xf32>
      %136 = arith.mulf %133, %135 : vector<16x8xf32>
      %c0_79 = arith.constant 0 : index
      %c0_80 = arith.constant 0 : index
      %137 = vector.load %arg15[%c0_79, %c0_80] : memref<16x32xf32, #tpu.memory_space<vmem>>, vector<16x8xf32>
      tpu.vector_store %arg15[%c0_79, %c0_80], %136 {strides = array<i32>} : memref<16x32xf32, #tpu.memory_space<vmem>>, vector<16x8xf32>,
      %c0_81 = arith.constant 0 : index
      %c8_82 = arith.constant 8 : index
      %138 = vector.load %arg15[%c0_81, %c8_82] : memref<16x32xf32, #tpu.memory_space<vmem>>, vector<16x8xf32>
      %139 = vector.extract_strided_slice %132 {offsets = [0, 1], sizes = [16, 1], strides = [1, 1]} : vector<16x4xf32> to vector<16x1xf32>
      %140 = vector.broadcast %139 : vector<16x1xf32> to vector<16x8xf32>
      %141 = arith.mulf %138, %140 : vector<16x8xf32>
      %c0_83 = arith.constant 0 : index
      %c8_84 = arith.constant 8 : index
      %142 = vector.load %arg15[%c0_83, %c8_84] : memref<16x32xf32, #tpu.memory_space<vmem>>, vector<16x8xf32>
      tpu.vector_store %arg15[%c0_83, %c8_84], %141 {strides = array<i32>} : memref<16x32xf32, #tpu.memory_space<vmem>>, vector<16x8xf32>,
      %c0_85 = arith.constant 0 : index
      %c16_86 = arith.constant 16 : index
      %143 = vector.load %arg15[%c0_85, %c16_86] : memref<16x32xf32, #tpu.memory_space<vmem>>, vector<16x8xf32>
      %144 = vector.extract_strided_slice %132 {offsets = [0, 2], sizes = [16, 1], strides = [1, 1]} : vector<16x4xf32> to vector<16x1xf32>
      %145 = vector.broadcast %144 : vector<16x1xf32> to vector<16x8xf32>
      %146 = arith.mulf %143, %145 : vector<16x8xf32>
      %c0_87 = arith.constant 0 : index
      %c16_88 = arith.constant 16 : index
      %147 = vector.load %arg15[%c0_87, %c16_88] : memref<16x32xf32, #tpu.memory_space<vmem>>, vector<16x8xf32>
      tpu.vector_store %arg15[%c0_87, %c16_88], %146 {strides = array<i32>} : memref<16x32xf32, #tpu.memory_space<vmem>>, vector<16x8xf32>,
      %c0_89 = arith.constant 0 : index
      %c24_90 = arith.constant 24 : index
      %148 = vector.load %arg15[%c0_89, %c24_90] : memref<16x32xf32, #tpu.memory_space<vmem>>, vector<16x8xf32>
      %149 = vector.extract_strided_slice %132 {offsets = [0, 3], sizes = [16, 1], strides = [1, 1]} : vector<16x4xf32> to vector<16x1xf32>
      %150 = vector.broadcast %149 : vector<16x1xf32> to vector<16x8xf32>
      %151 = arith.mulf %148, %150 : vector<16x8xf32>
      %c0_91 = arith.constant 0 : index
      %c24_92 = arith.constant 24 : index
      %152 = vector.load %arg15[%c0_91, %c24_92] : memref<16x32xf32, #tpu.memory_space<vmem>>, vector<16x8xf32>
      tpu.vector_store %arg15[%c0_91, %c24_92], %151 {strides = array<i32>} : memref<16x32xf32, #tpu.memory_space<vmem>>, vector<16x8xf32>,
      %c0_93 = arith.constant 0 : index
      %c0_94 = arith.constant 0 : index
      %153 = vector.load %arg15[%c0_93, %c0_94] : memref<16x32xf32, #tpu.memory_space<vmem>>, vector<16x32xf32>
      %154 = arith.truncf %153 : vector<16x32xf32> to vector<16x32xbf16>
      %c0_95 = arith.constant 0 : index
      %c0_96 = arith.constant 0 : index
      %155 = vector.load %arg9[%c0_95, %c0_96] : memref<32x32xbf16, #tpu.memory_space<vmem>>, vector<32x32xbf16>
      %cst_97 = arith.constant dense<0.000000e+00> : vector<16x32xf32>
      %156 = tpu.matmul %154, %155, %cst_97 {dimension_numbers = #tpu.dot_dimension_numbers<[1], [0], [0], [1], [0, 0, 1, 1], [], []>} : vector<16x32xbf16>, vector<32x32xbf16>, vector<16x32xf32> -> vector<16x32xf32>
      %c0_98 = arith.constant 0 : index
      %c0_99 = arith.constant 0 : index
      %157 = vector.load %arg10[%c0_98, %c0_99] : memref<1x32xf32, #tpu.memory_space<vmem>>, vector<1x32xf32>
      %158 = vector.broadcast %157 : vector<1x32xf32> to vector<16x32xf32>
      %159 = arith.addf %156, %158 : vector<16x32xf32>
      %c0_100 = arith.constant 0 : index
      %c0_101 = arith.constant 0 : index
      %c0_102 = arith.constant 0 : index
      %160 = vector.load %arg11[%c0_100, %c0_101, %c0_102] : memref<1x16x32xf32, #tpu.memory_space<vmem>>, vector<1x16x32xf32>
      %161 = vector.shape_cast %160 : vector<1x16x32xf32> to vector<16x32xf32>
      %162 = vector.shape_cast %159 : vector<16x32xf32> to vector<1x16x32xf32>
      tpu.vector_store %arg11[%c0_100, %c0_101, %c0_102], %162 {strides = array<i32>} : memref<1x16x32xf32, #tpu.memory_space<vmem>>, vector<1x16x32xf32>,
    } else {
    }
    return
  }
  func.func @transform_0(%arg0: i32, %arg1: i32, %arg2: i32) -> (i32, i32, i32) {
    %c0_i32 = arith.constant 0 : i32
    %c0_i32_0 = arith.constant 0 : i32
    return %arg0, %arg1, %c0_i32 : i32, i32, i32
  }
  func.func @transform_1(%arg0: i32, %arg1: i32, %arg2: i32) -> (i32, i32, i32) {
    %c0_i32 = arith.constant 0 : i32
    %c0_i32_0 = arith.constant 0 : i32
    return %arg0, %arg2, %c0_i32 : i32, i32, i32
  }
  func.func @transform_2(%arg0: i32, %arg1: i32, %arg2: i32) -> (i32, i32, i32) {
    %c0_i32 = arith.constant 0 : i32
    %c0_i32_0 = arith.constant 0 : i32
    return %arg0, %arg2, %c0_i32 : i32, i32, i32
  }
  func.func @transform_3(%arg0: i32, %arg1: i32, %arg2: i32) -> (i32, i32, i32) {
    %c0_i32 = arith.constant 0 : i32
    return %arg0, %arg1, %arg2 : i32, i32, i32
  }
  func.func @transform_4(%arg0: i32, %arg1: i32, %arg2: i32) -> (i32, i32) {
    %c0_i32 = arith.constant 0 : i32
    %c0_i32_0 = arith.constant 0 : i32
    %c0_i32_1 = arith.constant 0 : i32
    return %c0_i32, %c0_i32_0 : i32, i32
  }
  func.func @transform_5(%arg0: i32, %arg1: i32, %arg2: i32) -> (i32, i32) {
    %c0_i32 = arith.constant 0 : i32
    %c0_i32_0 = arith.constant 0 : i32
    %c0_i32_1 = arith.constant 0 : i32
    return %c0_i32, %c0_i32_0 : i32, i32
  }
  func.func @transform_6(%arg0: i32, %arg1: i32, %arg2: i32) -> (i32, i32) {
    %c0_i32 = arith.constant 0 : i32
    %c0_i32_0 = arith.constant 0 : i32
    %c0_i32_1 = arith.constant 0 : i32
    return %c0_i32, %c0_i32_0 : i32, i32
  }
  func.func @transform_7(%arg0: i32, %arg1: i32, %arg2: i32) -> (i32, i32) {
    %c0_i32 = arith.constant 0 : i32
    %c0_i32_0 = arith.constant 0 : i32
    %c0_i32_1 = arith.constant 0 : i32
    return %c0_i32, %c0_i32_0 : i32, i32
  }
  func.func @transform_8(%arg0: i32, %arg1: i32, %arg2: i32) -> (i32, i32, i32) {
    %c0_i32 = arith.constant 0 : i32
    %c0_i32_0 = arith.constant 0 : i32
    return %arg0, %arg1, %c0_i32 : i32, i32, i32
  }
}

</mosaic_0001>

<llo_original>
// kernel: tpu_custom_call.1
$region0: #{tpu_custom_call.1}
  #allocation0 [shape = 'u32[]', space=smem, size = 0x4, offset = 0x4, fixed_abs, tag = 'smem constant byte address 0x4 - core index']
  #allocation1 [shape = 'u32[144,128]{1,0:T(1,128)}', space=vmem, size = 0x12000, scoped, tag = 'internal scratch']
  #allocation2 [shape = 'bf16[16,32]{1,0:T(16,128)(2,1)}', space=vmem, size = 0x1000, scoped, tag = 'scratch operand']
  #allocation3 [shape = 'f32[16,4]{1,0:T(8,128)}', space=vmem, size = 0x2000, scoped, tag = 'scratch operand']
  #allocation4 [shape = 'f32[16,4]{1,0:T(8,128)}', space=vmem, size = 0x2000, scoped, tag = 'scratch operand']
  #allocation5 [shape = 'f32[16,32]{1,0:T(8,128)}', space=vmem, size = 0x2000, scoped, tag = 'scratch operand']
  %s0 = inlined_call_operand.hbm [shape: bf16[2,16,32], index: 0, kind: input, shape index: {}]
  %s1 = inlined_call_operand.hbm [shape: bf16[2,16,32], index: 1, kind: input, shape index: {}]
  %s2 = inlined_call_operand.hbm [shape: bf16[2,16,32], index: 2, kind: input, shape index: {}]
  %s3 = inlined_call_operand.hbm [shape: bf16[2,16,16], index: 3, kind: input, shape index: {}]
  %s4 = inlined_call_operand.hbm [shape: bf16[32,32], index: 4, kind: input, shape index: {}]
  %s5 = inlined_call_operand.vmem [shape: f32[1,32], index: 5, kind: input, shape index: {}]
  %s6 = inlined_call_operand.vmem [shape: bf16[32,32], index: 6, kind: input, shape index: {}]
  %s7 = inlined_call_operand.vmem [shape: f32[1,32], index: 7, kind: input, shape index: {}]
  %s8 = inlined_call_operand.hbm [shape: f32[2,16,32], index: 8, kind: output, shape index: {}]
  %s9 = sld [smem:[#allocation0]]
  $region93: #{tpu_custom_call.1} parent=0
    _
  %s11 = ssub.s32 1, %s9
  %s12 = scalar_select 0, %s11, %s9
  $region1: #{tpu_custom_call.1} parent=0
    #allocation6 [shape = 'u8[8192]{0}', space=vmem, size = 0x2000, scoped, tag = 'input window, operand 0']
    #allocation7 [shape = 's32[2]{0}', space=sflag, size = 0x8, scoped, tag = 'scoped memory for tpu_custom_call.1']
    #allocation8 [shape = 's32[2]{0}', space=sflag, size = 0x8, scoped, tag = 'scoped memory for tpu_custom_call.1']
    #allocation9 [shape = 'u8[8192]{0}', space=vmem, size = 0x2000, scoped, tag = 'input window, operand 1']
    #allocation10 [shape = 's32[2]{0}', space=sflag, size = 0x8, scoped, tag = 'scoped memory for tpu_custom_call.1']
    #allocation11 [shape = 'u8[8192]{0}', space=vmem, size = 0x2000, scoped, tag = 'input window, operand 2']
    #allocation12 [shape = 'u8[8192]{0}', space=vmem, size = 0x2000, scoped, tag = 'input window, operand 3']
    #allocation13 [shape = 's32[2]{0}', space=sflag, size = 0x8, scoped, tag = 'scoped memory for tpu_custom_call.1']
    #allocation14 [shape = 'u8[8192]{0}', space=vmem, size = 0x2000, scoped, tag = 'input window, operand 4, single buffered']
    #allocation15 [shape = 'u8[16384]{0}', space=vmem, size = 0x4000, scoped, tag = 'output window, operand 0']
    %13 = vsyncpa [#allocation7], 0
    %s14 = scalar_lea.sflag [#allocation7], 1
    %15 = vsyncpa %s14, 0
    %16 = vsyncpa [#allocation10], 0
    %s17 = scalar_lea.sflag [#allocation10], 1
    %18 = vsyncpa %s17, 0
    %19 = vsyncpa [#allocation13], 0
    %s20 = scalar_lea.sflag [#allocation13], 1
    %21 = vsyncpa %s20, 0
    %22 = vsyncpa [#allocation8], 0
    %s23 = scalar_lea.sflag [#allocation8], 1
    %24 = vsyncpa %s23, 0
    loop: start=0, step=1, limit=4
    $region2: #{tpu_custom_call.1} parent=1 // loop_pre_header
      _
    $region3: #{tpu_custom_call.1} parent=1 // loop_header
      %s26 = sphi 0, %s30
      %p27 = scmp.ge.s32.totalorder %s26, 4
      %s33 = sphi 0, %s52
      %s34 = sphi 0, %s48
      %s35 = sphi 0, %s44
      %s36 = sphi 0, %s33
      %s37 = sphi 0, %s34
      %s38 = sphi 0, %s35
      %s39 = sphi 0, %s36
      %s40 = sphi 0, %s37
      %s41 = sphi 0, %s38
      %s57 = sphi 0, %s59
      %s60 = sphi 0, %s57
      %s61 = sphi 0, %s60
      %s77 = sphi 0, %s61
      %s85 = sphi 0, %s87
      %s88 = sphi 0, %s85
      %s89 = sphi 0, %s88
      %s105 = sphi 0, %s89
      %s113 = sphi 0, %s115
      %s116 = sphi 0, %s113
      %s117 = sphi 0, %s116
      %s133 = sphi 0, %s117
      %s143 = sphi 0, %s145
      %s146 = sphi 0, %s143
      %s147 = sphi 0, %s146
      %s163 = sphi 0, %s147
      %s167 = sphi 0, %s167
      %s169 = sphi 0, %s167
      %s170 = sphi 0, %s169
      %s184 = sphi 0, %s170
      %s188 = sphi 0, %s188
      %s190 = sphi 0, %s188
      %s191 = sphi 0, %s190
      %s205 = sphi 0, %s191
      %s209 = sphi 0, %s209
      %s211 = sphi 0, %s209
      %s212 = sphi 0, %s211
      %s226 = sphi 0, %s212
      %s230 = sphi 0, %s230
      %s232 = sphi 0, %s230
      %s233 = sphi 0, %s232
      %s247 = sphi 0, %s233
      %s255 = sphi 0, %s257
      %s258 = sphi 0, %s255
      %s259 = sphi 0, %s258
      %s275 = sphi 0, %s259
    $region4: #{tpu_custom_call.1} parent=1 // loop_header_branch
      %29 = sbr.rel (%p27) target = $region8
    $region5: #{tpu_custom_call.1} parent=1 // loop_body
      %s31 = ssub.s32 %s26, 1
      %s32 = ssub.s32 %s26, 2
      %s42 = sadd.s32 1, %s35
      %p43 = scmp.ge.s32.totalorder %s42, 1
      %s44 = scalar_select %p43, 0, %s42
      %s45 = sadd.s32 1, %s34
      %s46 = scalar_select %p43, %s45, %s34
      %p47 = scmp.ge.s32.totalorder %s46, 1
      %s48 = scalar_select %p47, 0, %s46
      %s49 = sadd.s32 1, %s33
      %s50 = scalar_select %p47, %s49, %s33
      %p51 = scmp.ge.s32.totalorder %s50, 2
      %s52 = scalar_select %p51, 0, %s50
      %s53 = ssub.s32 %s33, %s52
      %s54 = ssub.s32 %s34, %s48
      %s55 = sor.u32 %s53, %s54
      %p56 = scmp.eq.s32.totalorder %s55, 0
      %s58 = sadd.s32 %s57, 1
      %s59 = scalar_select %p56, %s57, %s58
      %p62 = pneg %p56
      %p63 = scmp.eq.s32.totalorder %s26, 1
      %p64 = por %p62, %p63
      %p65 = scmp.ne.s32.totalorder %s57, %s60
      %p66 = scmp.eq.s32.totalorder %s26, 0
      %p67 = por %p65, %p66
      %p68 = scmp.ne.s32.totalorder %s57, %s60
      %p69 = scmp.eq.s32.totalorder %s31, 1
      %p70 = por %p68, %p69
      %p71 = scmp.ne.s32.totalorder %s60, %s61
      %p72 = scmp.eq.s32.totalorder %s31, 0
      %p73 = por %p71, %p72
      %p74 = scmp.ne.s32.totalorder %s60, %s61
      %p75 = scmp.eq.s32.totalorder %s32, 1
      %p76 = por %p74, %p75
      %p78 = scmp.ne.s32.totalorder %s61, %s77
      %p79 = scmp.eq.s32.totalorder %s32, 0
      %p80 = por %p78, %p79
      %s81 = ssub.s32 %s33, %s52
      %s82 = ssub.s32 %s35, %s44
      %s83 = sor.u32 %s81, %s82
      %p84 = scmp.eq.s32.totalorder %s83, 0
      %s86 = sadd.s32 %s85, 1
      %s87 = scalar_select %p84, %s85, %s86
      %p90 = pneg %p84
      %p91 = scmp.eq.s32.totalorder %s26, 1
      %p92 = por %p90, %p91
      %p93 = scmp.ne.s32.totalorder %s85, %s88
      %p94 = scmp.eq.s32.totalorder %s26, 0
      %p95 = por %p93, %p94
      %p96 = scmp.ne.s32.totalorder %s85, %s88
      %p97 = scmp.eq.s32.totalorder %s31, 1
      %p98 = por %p96, %p97
      %p99 = scmp.ne.s32.totalorder %s88, %s89
      %p100 = scmp.eq.s32.totalorder %s31, 0
      %p101 = por %p99, %p100
      %p102 = scmp.ne.s32.totalorder %s88, %s89
      %p103 = scmp.eq.s32.totalorder %s32, 1
      %p104 = por %p102, %p103
      %p106 = scmp.ne.s32.totalorder %s89, %s105
      %p107 = scmp.eq.s32.totalorder %s32, 0
      %p108 = por %p106, %p107
      %s109 = ssub.s32 %s33, %s52
      %s110 = ssub.s32 %s35, %s44
      %s111 = sor.u32 %s109, %s110
      %p112 = scmp.eq.s32.totalorder %s111, 0
      %s114 = sadd.s32 %s113, 1
      %s115 = scalar_select %p112, %s113, %s114
      %p118 = pneg %p112
      %p119 = scmp.eq.s32.totalorder %s26, 1
      %p120 = por %p118, %p119
      %p121 = scmp.ne.s32.totalorder %s113, %s116
      %p122 = scmp.eq.s32.totalorder %s26, 0
      %p123 = por %p121, %p122
      %p124 = scmp.ne.s32.totalorder %s113, %s116
      %p125 = scmp.eq.s32.totalorder %s31, 1
      %p126 = por %p124, %p125
      %p127 = scmp.ne.s32.totalorder %s116, %s117
      %p128 = scmp.eq.s32.totalorder %s31, 0
      %p129 = por %p127, %p128
      %p130 = scmp.ne.s32.totalorder %s116, %s117
      %p131 = scmp.eq.s32.totalorder %s32, 1
      %p132 = por %p130, %p131
      %p134 = scmp.ne.s32.totalorder %s117, %s133
      %p135 = scmp.eq.s32.totalorder %s32, 0
      %p136 = por %p134, %p135
      %s137 = ssub.s32 %s33, %s52
      %s138 = ssub.s32 %s34, %s48
      %s139 = sor.u32 %s137, %s138
      %s140 = ssub.s32 %s35, %s44
      %s141 = sor.u32 %s139, %s140
      %p142 = scmp.eq.s32.totalorder %s141, 0
      %s144 = sadd.s32 %s143, 1
      %s145 = scalar_select %p142, %s143, %s144
      %p148 = pneg %p142
      %p149 = scmp.eq.s32.totalorder %s26, 1
      %p150 = por %p148, %p149
      %p151 = scmp.ne.s32.totalorder %s143, %s146
      %p152 = scmp.eq.s32.totalorder %s26, 0
      %p153 = por %p151, %p152
      %p154 = scmp.ne.s32.totalorder %s143, %s146
      %p155 = scmp.eq.s32.totalorder %s31, 1
      %p156 = por %p154, %p155
      %p157 = scmp.ne.s32.totalorder %s146, %s147
      %p158 = scmp.eq.s32.totalorder %s31, 0
      %p159 = por %p157, %p158
      %p160 = scmp.ne.s32.totalorder %s146, %s147
      %p161 = scmp.eq.s32.totalorder %s32, 1
      %p162 = por %p160, %p161
      %p164 = scmp.ne.s32.totalorder %s147, %s163
      %p165 = scmp.eq.s32.totalorder %s32, 0
      %p166 = por %p164, %p165
      %s168 = sadd.s32 %s167, 1
      %p171 = scmp.eq.s32.totalorder %s26, 1
      %p172 = scmp.ne.s32.totalorder %s167, %s169
      %p173 = scmp.eq.s32.totalorder %s26, 0
      %p174 = por %p172, %p173
      %p175 = scmp.ne.s32.totalorder %s167, %s169
      %p176 = scmp.eq.s32.totalorder %s31, 1
      %p177 = por %p175, %p176
      %p178 = scmp.ne.s32.totalorder %s169, %s170
      %p179 = scmp.eq.s32.totalorder %s31, 0
      %p180 = por %p178, %p179
      %p181 = scmp.ne.s32.totalorder %s169, %s170
      %p182 = scmp.eq.s32.totalorder %s32, 1
      %p183 = por %p181, %p182
      %p185 = scmp.ne.s32.totalorder %s170, %s184
      %p186 = scmp.eq.s32.totalorder %s32, 0
      %p187 = por %p185, %p186
      %s189 = sadd.s32 %s188, 1
      %p192 = scmp.eq.s32.totalorder %s26, 1
      %p193 = scmp.ne.s32.totalorder %s188, %s190
      %p194 = scmp.eq.s32.totalorder %s26, 0
      %p195 = por %p193, %p194
      %p196 = scmp.ne.s32.totalorder %s188, %s190
      %p197 = scmp.eq.s32.totalorder %s31, 1
      %p198 = por %p196, %p197
      %p199 = scmp.ne.s32.totalorder %s190, %s191
      %p200 = scmp.eq.s32.totalorder %s31, 0
      %p201 = por %p199, %p200
      %p202 = scmp.ne.s32.totalorder %s190, %s191
      %p203 = scmp.eq.s32.totalorder %s32, 1
      %p204 = por %p202, %p203
      %p206 = scmp.ne.s32.totalorder %s191, %s205
      %p207 = scmp.eq.s32.totalorder %s32, 0
      %p208 = por %p206, %p207
      %s210 = sadd.s32 %s209, 1
      %p213 = scmp.eq.s32.totalorder %s26, 1
      %p214 = scmp.ne.s32.totalorder %s209, %s211
      %p215 = scmp.eq.s32.totalorder %s26, 0
      %p216 = por %p214, %p215
      %p217 = scmp.ne.s32.totalorder %s209, %s211
      %p218 = scmp.eq.s32.totalorder %s31, 1
      %p219 = por %p217, %p218
      %p220 = scmp.ne.s32.totalorder %s211, %s212
      %p221 = scmp.eq.s32.totalorder %s31, 0
      %p222 = por %p220, %p221
      %p223 = scmp.ne.s32.totalorder %s211, %s212
      %p224 = scmp.eq.s32.totalorder %s32, 1
      %p225 = por %p223, %p224
      %p227 = scmp.ne.s32.totalorder %s212, %s226
      %p228 = scmp.eq.s32.totalorder %s32, 0
      %p229 = por %p227, %p228
      %s231 = sadd.s32 %s230, 1
      %p234 = scmp.eq.s32.totalorder %s26, 1
      %p235 = scmp.ne.s32.totalorder %s230, %s232
      %p236 = scmp.eq.s32.totalorder %s26, 0
      %p237 = por %p235, %p236
      %p238 = scmp.ne.s32.totalorder %s230, %s232
      %p239 = scmp.eq.s32.totalorder %s31, 1
      %p240 = por %p238, %p239
      %p241 = scmp.ne.s32.totalorder %s232, %s233
      %p242 = scmp.eq.s32.totalorder %s31, 0
      %p243 = por %p241, %p242
      %p244 = scmp.ne.s32.totalorder %s232, %s233
      %p245 = scmp.eq.s32.totalorder %s32, 1
      %p246 = por %p244, %p245
      %p248 = scmp.ne.s32.totalorder %s233, %s247
      %p249 = scmp.eq.s32.totalorder %s32, 0
      %p250 = por %p248, %p249
      %s251 = ssub.s32 %s33, %s52
      %s252 = ssub.s32 %s34, %s48
      %s253 = sor.u32 %s251, %s252
      %p254 = scmp.eq.s32.totalorder %s253, 0
      %s256 = sadd.s32 %s255, 1
      %s257 = scalar_select %p254, %s255, %s256
      %p260 = pneg %p254
      %p261 = scmp.eq.s32.totalorder %s26, 1
      %p262 = por %p260, %p261
      %p263 = scmp.ne.s32.totalorder %s255, %s258
      %p264 = scmp.eq.s32.totalorder %s26, 0
      %p265 = por %p263, %p264
      %p266 = scmp.ne.s32.totalorder %s255, %s258
      %p267 = scmp.eq.s32.totalorder %s31, 1
      %p268 = por %p266, %p267
      %p269 = scmp.ne.s32.totalorder %s258, %s259
      %p270 = scmp.eq.s32.totalorder %s31, 0
      %p271 = por %p269, %p270
      %p272 = scmp.ne.s32.totalorder %s258, %s259
      %p273 = scmp.eq.s32.totalorder %s32, 1
      %p274 = por %p272, %p273
      %p276 = scmp.ne.s32.totalorder %s259, %s275
      %p277 = scmp.eq.s32.totalorder %s32, 0
      %p278 = por %p276, %p277
      %p279 = scmp.le.s32.totalorder 1, %s26
      %p280 = scmp.lt.s32.totalorder %s26, 3
      %p281 = pnand %p279, %p280
      %p282 = pneg %p281
      // Predicated region
      $region9: #{tpu_custom_call.1} parent=5 // pred_check
        _
      $region10: #{tpu_custom_call.1} parent=5 // pred_check_branch
        %284 = sbr.rel (%p281) target = $region12
      $region11: #{tpu_custom_call.1} parent=5 // pred_region
        %s285 = ssub.s32 %s26, 1
        // Predicated region
        $region13: #{tpu_custom_call.1} parent=11 // pred_check
          %p286 = pneg %p180
        $region14: #{tpu_custom_call.1} parent=11 // pred_check_branch
          %288 = sbr.rel (%p286) target = $region16
        $region15: #{tpu_custom_call.1} parent=11 // pred_region
          %s290 = ssub.s32 256, 256
          %291 = vsyncadd [#allocation13], %s290
          %s292 = sshll.u32 [#allocation14], 4
          %s293 = int_to_ptr.vmem [resolvable:$true] %s292
          %298 = dma.hbm_to_vmem [thread:$0]  %s4, 256, %s293, [#allocation13], 64, 64, 4
        $region16: #{tpu_custom_call.1} parent=11 // pred_fallthru
          _
        // Predicated region
        $region17: #{tpu_custom_call.1} parent=11 // pred_check
          %p299 = pneg %p201
        $region18: #{tpu_custom_call.1} parent=11 // pred_check_branch
          %301 = sbr.rel (%p299) target = $region20
        $region19: #{tpu_custom_call.1} parent=11 // pred_region
          _
        $region20: #{tpu_custom_call.1} parent=11 // pred_fallthru
          _
        // Predicated region
        $region21: #{tpu_custom_call.1} parent=11 // pred_check
          %p302 = pneg %p222
        $region22: #{tpu_custom_call.1} parent=11 // pred_check_branch
          %304 = sbr.rel (%p302) target = $region24
        $region23: #{tpu_custom_call.1} parent=11 // pred_region
          _
        $region24: #{tpu_custom_call.1} parent=11 // pred_fallthru
          _
        // Predicated region
        $region25: #{tpu_custom_call.1} parent=11 // pred_check
          %p305 = pneg %p243
        $region26: #{tpu_custom_call.1} parent=11 // pred_check_branch
          %307 = sbr.rel (%p305) target = $region28
        $region27: #{tpu_custom_call.1} parent=11 // pred_region
          _
        $region28: #{tpu_custom_call.1} parent=11 // pred_fallthru
          _
      $region12: #{tpu_custom_call.1} parent=5 // pred_fallthru
        _
      %p308 = scmp.lt.s32.totalorder %s26, 2
      // Predicated region
      $region29: #{tpu_custom_call.1} parent=5 // pred_check
        %p309 = pneg %p308
      $region30: #{tpu_custom_call.1} parent=5 // pred_check_branch
        %311 = sbr.rel (%p309) target = $region32
      $region31: #{tpu_custom_call.1} parent=5 // pred_region
        // Predicated region
        $region33: #{tpu_custom_call.1} parent=31 // pred_check
          %p312 = pneg %p67
        $region34: #{tpu_custom_call.1} parent=31 // pred_check_branch
          %314 = sbr.rel (%p312) target = $region36
        $region35: #{tpu_custom_call.1} parent=31 // pred_region
          %s315 = sand.u32 %s57, 1
          %s316 = scalar_lea.sflag [#allocation7], %s315
          %s317 = sand.u32 %s57, 1
          %s318 = smul.addr %s317, 8
          %s319 = scalar_lea.vmem [#allocation6], %s318
          %s320 = smul.u32 2, %s34
          %s322 = ssub.s32 128, 128
          %323 = vsyncadd %s316, %s322
          %s324 = smul.addr %s33, 2
          %s325 = sadd.s32 %s320, %s324
          %s326 = smul.addr %s325, 64
          %s327 = scalar_lea.hbm %s0, %s326
          %s328 = sshll.u32 %s319, 4
          %s329 = int_to_ptr.vmem [resolvable:$true] %s328
          %334 = dma.hbm_to_vmem [thread:$0]  %s327, 128, %s329, %s316, 64, 64, 4
        $region36: #{tpu_custom_call.1} parent=31 // pred_fallthru
          _
        // Predicated region
        $region37: #{tpu_custom_call.1} parent=31 // pred_check
          %p335 = pneg %p95
        $region38: #{tpu_custom_call.1} parent=31 // pred_check_branch
          %337 = sbr.rel (%p335) target = $region40
        $region39: #{tpu_custom_call.1} parent=31 // pred_region
          %s338 = sand.u32 %s26, 1
          %s339 = scalar_lea.sflag [#allocation10], %s338
          %s340 = sand.u32 %s85, 1
          %s341 = smul.addr %s340, 8
          %s342 = scalar_lea.vmem [#allocation9], %s341
          %s343 = smul.u32 2, %s35
          %s345 = ssub.s32 128, 128
          %346 = vsyncadd %s339, %s345
          %s347 = smul.addr %s33, 2
          %s348 = sadd.s32 %s343, %s347
          %s349 = smul.addr %s348, 64
          %s350 = scalar_lea.hbm %s1, %s349
          %s351 = sshll.u32 %s342, 4
          %s352 = int_to_ptr.vmem [resolvable:$true] %s351
          %357 = dma.hbm_to_vmem [thread:$0]  %s350, 128, %s352, %s339, 64, 64, 4
        $region40: #{tpu_custom_call.1} parent=31 // pred_fallthru
          _
        // Predicated region
        $region41: #{tpu_custom_call.1} parent=31 // pred_check
          %p358 = pneg %p123
        $region42: #{tpu_custom_call.1} parent=31 // pred_check_branch
          %360 = sbr.rel (%p358) target = $region44
        $region43: #{tpu_custom_call.1} parent=31 // pred_region
          %s361 = sand.u32 %s26, 1
          %s362 = scalar_lea.sflag [#allocation10], %s361
          %s363 = sand.u32 %s113, 1
          %s364 = smul.addr %s363, 8
          %s365 = scalar_lea.vmem [#allocation11], %s364
          %s366 = smul.u32 2, %s35
          %s368 = ssub.s32 128, 128
          %369 = vsyncadd %s362, %s368
          %s370 = smul.addr %s33, 2
          %s371 = sadd.s32 %s366, %s370
          %s372 = smul.addr %s371, 64
          %s373 = scalar_lea.hbm %s2, %s372
          %s374 = sshll.u32 %s365, 4
          %s375 = int_to_ptr.vmem [resolvable:$true] %s374
          %380 = dma.hbm_to_vmem [thread:$0]  %s373, 128, %s375, %s362, 64, 64, 4
        $region44: #{tpu_custom_call.1} parent=31 // pred_fallthru
          _
        // Predicated region
        $region45: #{tpu_custom_call.1} parent=31 // pred_check
          %p381 = pneg %p153
        $region46: #{tpu_custom_call.1} parent=31 // pred_check_branch
          %383 = sbr.rel (%p381) target = $region48
        $region47: #{tpu_custom_call.1} parent=31 // pred_region
          %s384 = sand.u32 %s26, 1
          %s385 = scalar_lea.sflag [#allocation13], %s384
          %s386 = sand.u32 %s143, 1
          %s387 = smul.addr %s386, 8
          %s388 = scalar_lea.vmem [#allocation12], %s387
          %s389 = smul.u32 2, %s34
          %s391 = ssub.s32 128, 128
          %392 = vsyncadd %s385, %s391
          %s393 = sadd.s32 %s35, %s389
          %s394 = smul.addr %s33, 2
          %s395 = sadd.s32 %s393, %s394
          %s396 = smul.addr %s395, 64
          %s397 = scalar_lea.hbm %s3, %s396
          %s398 = sshll.u32 %s388, 4
          %s399 = int_to_ptr.vmem [resolvable:$true] %s398
          %404 = dma.hbm_to_vmem [thread:$0]  %s397, 128, %s399, %s385, 64, 64, 4
        $region48: #{tpu_custom_call.1} parent=31 // pred_fallthru
          _
      $region32: #{tpu_custom_call.1} parent=5 // pred_fallthru
        _
      %p405 = scmp.le.s32.totalorder 1, %s26
      %p406 = scmp.lt.s32.totalorder %s26, 3
      %p407 = pnand %p405, %p406
      %p408 = pneg %p407
      // Predicated region
      $region49: #{tpu_custom_call.1} parent=5 // pred_check
        _
      $region50: #{tpu_custom_call.1} parent=5 // pred_check_branch
        %410 = sbr.rel (%p407) target = $region52
      $region51: #{tpu_custom_call.1} parent=5 // pred_region
        %s411 = ssub.s32 %s26, 1
        %s412 = sand.u32 %s60, 1
        %s413 = scalar_lea.sflag [#allocation7], %s412
        %s414 = sand.u32 %s60, 1
        %s415 = smul.addr %s414, 8
        %s416 = scalar_lea.vmem [#allocation6], %s415
        // Predicated region
        $region53: #{tpu_custom_call.1} parent=51 // pred_check
          %p417 = pneg %p73
        $region54: #{tpu_custom_call.1} parent=51 // pred_check_branch
          %419 = sbr.rel (%p417) target = $region56
        $region55: #{tpu_custom_call.1} parent=51 // pred_region
          %420 = dma.done %s413, 128
        $region56: #{tpu_custom_call.1} parent=51 // pred_fallthru
          _
        %s421 = sand.u32 %s31, 1
        %s422 = scalar_lea.sflag [#allocation10], %s421
        %s423 = sand.u32 %s88, 1
        %s424 = smul.addr %s423, 8
        %s425 = scalar_lea.vmem [#allocation9], %s424
        // Predicated region
        $region57: #{tpu_custom_call.1} parent=51 // pred_check
          %p426 = pneg %p101
        $region58: #{tpu_custom_call.1} parent=51 // pred_check_branch
          %428 = sbr.rel (%p426) target = $region60
        $region59: #{tpu_custom_call.1} parent=51 // pred_region
          %429 = dma.done %s422, 128
        $region60: #{tpu_custom_call.1} parent=51 // pred_fallthru
          _
        %s430 = sand.u32 %s31, 1
        %s431 = scalar_lea.sflag [#allocation10], %s430
        %s432 = sand.u32 %s116, 1
        %s433 = smul.addr %s432, 8
        %s434 = scalar_lea.vmem [#allocation11], %s433
        // Predicated region
        $region61: #{tpu_custom_call.1} parent=51 // pred_check
          %p435 = pneg %p129
        $region62: #{tpu_custom_call.1} parent=51 // pred_check_branch
          %437 = sbr.rel (%p435) target = $region64
        $region63: #{tpu_custom_call.1} parent=51 // pred_region
          %438 = dma.done %s431, 128
        $region64: #{tpu_custom_call.1} parent=51 // pred_fallthru
          _
        %s439 = sand.u32 %s31, 1
        %s440 = scalar_lea.sflag [#allocation13], %s439
        %s441 = sand.u32 %s146, 1
        %s442 = smul.addr %s441, 8
        %s443 = scalar_lea.vmem [#allocation12], %s442
        // Predicated region
        $region65: #{tpu_custom_call.1} parent=51 // pred_check
          %p444 = pneg %p159
        $region66: #{tpu_custom_call.1} parent=51 // pred_check_branch
          %446 = sbr.rel (%p444) target = $region68
        $region67: #{tpu_custom_call.1} parent=51 // pred_region
          %447 = dma.done %s440, 128
        $region68: #{tpu_custom_call.1} parent=51 // pred_fallthru
          _
        // Predicated region
        $region69: #{tpu_custom_call.1} parent=51 // pred_check
          %p448 = pneg %p180
        $region70: #{tpu_custom_call.1} parent=51 // pred_check_branch
          %450 = sbr.rel (%p448) target = $region72
        $region71: #{tpu_custom_call.1} parent=51 // pred_region
          %451 = dma.done [#allocation13], 256
        $region72: #{tpu_custom_call.1} parent=51 // pred_fallthru
          _
        %s452 = sand.u32 %s60, 1
        %s453 = scalar_lea.sflag [#allocation7], %s452
        %s454 = sand.u32 %s60, 1
        %s455 = smul.addr %s454, 8
        %s456 = scalar_lea.vmem [#allocation6], %s455
        %p457 = pneg %p73
        %p458 = pneg %p70
        %s459 = sand.u32 %s31, 1
        %s460 = scalar_lea.sflag [#allocation10], %s459
        %s461 = sand.u32 %s88, 1
        %s462 = smul.addr %s461, 8
        %s463 = scalar_lea.vmem [#allocation9], %s462
        %p464 = pneg %p101
        %p465 = pneg %p98
        %s466 = sand.u32 %s31, 1
        %s467 = scalar_lea.sflag [#allocation10], %s466
        %s468 = sand.u32 %s116, 1
        %s469 = smul.addr %s468, 8
        %s470 = scalar_lea.vmem [#allocation11], %s469
        %p471 = pneg %p129
        %p472 = pneg %p126
        %s473 = sand.u32 %s31, 1
        %s474 = scalar_lea.sflag [#allocation13], %s473
        %s475 = sand.u32 %s146, 1
        %s476 = smul.addr %s475, 8
        %s477 = scalar_lea.vmem [#allocation12], %s476
        %p478 = pneg %p159
        %p479 = pneg %p156
        %p480 = pneg %p180
        %p481 = pneg %p177
        %p482 = pneg %p201
        %p483 = pneg %p198
        %p484 = pneg %p222
        %p485 = pneg %p219
        %p486 = pneg %p243
        %p487 = pneg %p240
        %p488 = pneg %p271
        %p489 = pneg %p268
        %s490 = sand.u32 %s258, 1
        %s491 = scalar_lea.sflag [#allocation8], %s490
        %s492 = sand.u32 %s258, 1
        %s493 = smul.addr %s492, 16
        %s494 = scalar_lea.vmem [#allocation15], %s493
        %s495 = smul.u32 2, %s37
        %s496 = smul.u32 2, %s38
        %s497 = smul.u32 2, %s38
        %s498 = smul.u32 2, %s37
        %s499 = smul.u32 2, %s37
        %p503 = scmp.eq.s32.totalorder %s38, 0
        // Predicated region
        $region73: #{tpu_custom_call.1} parent=51 // pred_check
          %p504 = pneg %p503
        $region74: #{tpu_custom_call.1} parent=51 // pred_check_branch
          %506 = sbr.rel (%p504) target = $region76
        $region75: #{tpu_custom_call.1} parent=51 // pred_region
          %v507 = vld [vmem:[%s416] sm:$0xf]
          %v508 = vld [vmem:[%s416 + $0x4] sm:$0xf]
          %v509 = vld [vmem:[#allocation14] sm:$0xf]
          %v510 = vld [vmem:[#allocation14 + $0x4] sm:$0xf]
          %v511 = vld [vmem:[#allocation14 + $0x8] sm:$0xf]
          %v512 = vld [vmem:[#allocation14 + $0xc] sm:$0xf]
          %v513 = vld [vmem:[%s5] sm:$0x1]
          %v515 = vlaneseq
          %v516 = vshrl.u32 %v515, 7
          %v517 = vsub.s32 0, %v516
          %v518 = vrot.slane %v513, %v517
          %v522 = vunpack.c.l.b16 %v507
          %v523 = vunpack.c.l.b16 %v508
          %v524 = vpack.c.b16 %v523, %v522
          %v529 = vunpack.c.l.b16 %v509
          %v530 = vunpack.c.l.b16 %v510
          %v531 = vunpack.c.l.b16 %v511
          %v532 = vunpack.c.l.b16 %v512
          %v533 = vpack.c.b16 %v530, %v529
          %v534 = vpack.c.b16 %v532, %v531
          %vm537 = vcmask 261120
          %v539 = vsel %vm537, %v524, 0
          %541 = vmatprep.subr.bf16.mxu0 0
          %542 = vmatpush1.bf16.msra.mxu0 %v533
          %543 = vmatprep.subr.bf16.mxu0 0
          %544 = vmatpush1.bf16.msra.mxu0 %v534
          %545 = vmatprep.subr.bf16.mxu0 0
          %546 = vmatpush1.bf16.msra.mxu0 0
          %547 = vmatprep.subr.bf16.mxu0 0
          %548 = vmatpush1.bf16.msra.mxu0 0
          %549 = vmatprep.subr.bf16.mxu0 0
          %550 = vmatpush1.bf16.msra.mxu0 0
          %551 = vmatprep.subr.bf16.mxu0 0
          %552 = vmatpush1.bf16.msra.mxu0 0
          %553 = vmatprep.subr.bf16.mxu0 0
          %554 = vmatpush1.bf16.msra.mxu0 0
          %555 = vmatprep.subr.bf16.mxu0 0
          %556 = vmatpush1.bf16.msra.mxu0 0
          %557 = vmatprep.subr.bf16.mxu0 0
          %558 = vmatpush1.bf16.msra.mxu0 0
          %559 = vmatprep.subr.bf16.mxu0 0
          %560 = vmatpush1.bf16.msra.mxu0 0
          %561 = vmatprep.subr.bf16.mxu0 0
          %562 = vmatpush1.bf16.msra.mxu0 0
          %563 = vmatprep.subr.bf16.mxu0 0
          %564 = vmatpush1.bf16.msra.mxu0 0
          %565 = vmatprep.subr.bf16.mxu0 0
          %566 = vmatpush1.bf16.msra.mxu0 0
          %567 = vmatprep.subr.bf16.mxu0 0
          %568 = vmatpush1.bf16.msra.mxu0 0
          %569 = vmatprep.subr.bf16.mxu0 0
          %570 = vmatpush1.bf16.msra.mxu0 0
          %571 = vmatprep.subr.bf16.mxu0 0
          %572 = vmatpush1.bf16.msra.mxu0 0
          %573 = vmatprep.mubr.bf16.mxu0 0
          %574 = vmatmul.mubr.bf16.gmra.mrb[0].mxu0 %v539
          %v575 = vpop.f32.mrb[0].mxu0
          %v576 = vadd.f32 %v518, %v575
          %v577 = vpop.f32.mrb[0].mxu0
          %v578 = vpop.f32.mrb[0].mxu0
          %v579 = vadd.f32 %v518, %v578
          %v580 = vpop.f32.mrb[0].mxu0
          %581 = vdwg.mxu0
          %v582 = vpack.c.bf16 %v579, %v576
          %583 = vst.msk [vmem:[#allocation2] sm:$0xff] %vm537, %v582
          %vm584 = vcmask 31744
          %585 = vst.msk [vmem:[#allocation3] sm:$0xff] %vm584, -inf
          %586 = vst.msk [vmem:[#allocation3 + $0x8] sm:$0xff] %vm584, -inf
          %587 = vst.msk [vmem:[#allocation4] sm:$0xff] %vm584, 0.0
          %588 = vst.msk [vmem:[#allocation4 + $0x8] sm:$0xff] %vm584, 0.0
          %589 = vst.msk [vmem:[#allocation5] sm:$0xff] %vm537, 0.0
          %590 = vst.msk [vmem:[#allocation5 + $0x8] sm:$0xff] %vm537, 0.0
        $region76: #{tpu_custom_call.1} parent=51 // pred_fallthru
          _
        %v591 = vld [vmem:[%s425] sm:$0xf]
        %v592 = vld [vmem:[%s425 + $0x4] sm:$0xf]
        %v593 = vld [vmem:[%s434] sm:$0xf]
        %v594 = vld [vmem:[%s434 + $0x4] sm:$0xf]
        %v595 = vld [vmem:[%s443] sm:$0xf]
        %v596 = vld [vmem:[%s443 + $0x4] sm:$0xf]
        %vm597 = vcmp.eq.bf16.partialorder %v595, 0
        %vm598 = vcmp.eq.bf16.partialorder %v596, 0
        %v599 = vld [vmem:[#allocation2] sm:$0xff]
        %v602 = vunpack.c.l.b16 %v591
        %v603 = vunpack.c.l.b16 %v592
        %v604 = vpack.c.b16 %v603, %v602
        %vm605 = vcmask 64512
        %v607 = vsel %vm605, %v599, 0
        %v610 = vsel %vm605, %v604, 0
        %612 = vmatprep.subr.bf16.mxu0 0
        %613 = vmatpush1.bf16.xpose.msra.mxu0 %v610
        %614 = vmatprep.subr.bf16.mxu0 0
        %615 = vmatpush1.bf16.xpose.msra.mxu0 0
        %616 = vmatprep.subr.bf16.mxu0 0
        %617 = vmatpush1.bf16.xpose.msra.mxu0 0
        %618 = vmatprep.subr.bf16.mxu0 0
        %619 = vmatpush1.bf16.xpose.msra.mxu0 0
        %620 = vmatprep.subr.bf16.mxu0 0
        %621 = vmatpush1.bf16.xpose.msra.mxu0 0
        %622 = vmatprep.subr.bf16.mxu0 0
        %623 = vmatpush1.bf16.xpose.msra.mxu0 0
        %624 = vmatprep.subr.bf16.mxu0 0
        %625 = vmatpush1.bf16.xpose.msra.mxu0 0
        %626 = vmatprep.subr.bf16.mxu0 0
        %627 = vmatpush1.bf16.xpose.msra.mxu0 0
        %628 = vmatprep.subr.bf16.mxu0 0
        %629 = vmatpush1.bf16.xpose.msra.mxu0 0
        %630 = vmatprep.subr.bf16.mxu0 0
        %631 = vmatpush1.bf16.xpose.msra.mxu0 0
        %632 = vmatprep.subr.bf16.mxu0 0
        %633 = vmatpush1.bf16.xpose.msra.mxu0 0
        %634 = vmatprep.subr.bf16.mxu0 0
        %635 = vmatpush1.bf16.xpose.msra.mxu0 0
        %636 = vmatprep.subr.bf16.mxu0 0
        %637 = vmatpush1.bf16.xpose.msra.mxu0 0
        %638 = vmatprep.subr.bf16.mxu0 0
        %639 = vmatpush1.bf16.xpose.msra.mxu0 0
        %640 = vmatprep.subr.bf16.mxu0 0
        %641 = vmatpush1.bf16.xpose.msra.mxu0 0
        %642 = vmatprep.subr.bf16.mxu0 0
        %643 = vmatpush1.bf16.xpose.msra.mxu0 0
        %644 = vmatprep.mubr.bf16.mxu0 0
        %645 = vmatmul.mubr.bf16.gmra.mrb[0].mxu0 %v607
        %v646 = vpop.f32.mrb[0].mxu0
        %v647 = vadd.f32 0.0, %v646
        %v648 = vpop.f32.mrb[0].mxu0
        %v649 = vpop.f32.mrb[0].mxu0
        %v650 = vadd.f32 0.0, %v649
        %v651 = vpop.f32.mrb[0].mxu0
        %652 = vdwg.mxu0
        %v653 = vsel %vm597, 65537, 0
        %v654 = vsel %vm598, 65537, 0
        %v655 = vunpack.c.l.b16 %v653
        %v656 = vunpack.c.l.b16 %v654
        %vm657 = vcmp.ne.s32.totalorder %v655, 0
        %vm658 = vcmp.ne.s32.totalorder %v656, 0
        %v659 = vsel %vm657, -1e+09, %v647
        %v660 = vsel %vm658, -1e+09, %v650
        %v661 = vld [vmem:[#allocation3] sm:$0xff]
        %v662 = vld [vmem:[#allocation3 + $0x8] sm:$0xff]
        %vm663 = vcmask 130048
        %v664 = vsel %vm663, %v659, -inf
        %665 = vmax.xlane.f32.xlu0 %v664
        %v666 = vpop.xlane.xlu0 %665
        %v667 = vsel %vm663, %v660, -inf
        %668 = vmax.xlane.f32.xlu0 %v667
        %v669 = vpop.xlane.xlu0 %668
        %v670 = vmax.f32 %v661, %v666
        %v671 = vmax.f32 %v662, %v669
        %v672 = vsub.f32 %v661, %v670
        %v673 = vsub.f32 %v662, %v671
        %v674 = vmul.f32 %v672, 1.442695
        %v675 = vpow.pop %v674
        %v676 = vmul.f32 %v673, 1.442695
        %v677 = vpow.pop %v676
        %679 = vset.pattern.permute.xlu0 0
        %680 = vperm.xlu0 %679, %v670
        %v681 = vpop.permute.xlu0 %680
        %684 = vset.pattern.permute.xlu0 0
        %685 = vperm.xlu0 %684, %v671
        %v686 = vpop.permute.xlu0 %685
        %v688 = vsub.f32 %v659, %v681
        %v689 = vsub.f32 %v660, %v686
        %v690 = vmul.f32 %v688, 1.442695
        %v691 = vpow.pop %v690
        %v692 = vmul.f32 %v689, 1.442695
        %v693 = vpow.pop %v692
        %v694 = vld [vmem:[#allocation4] sm:$0xff]
        %v695 = vld [vmem:[#allocation4 + $0x8] sm:$0xff]
        %v696 = vmul.f32 %v675, %v694
        %v697 = vmul.f32 %v677, %v695
        %v698 = vsel %vm663, %v691, 0.0
        %699 = vadd.xlane.f32.xlu0 %v698
        %v700 = vpop.xlane.xlu0 %699
        %v701 = vsel %vm663, %v693, 0.0
        %702 = vadd.xlane.f32.xlu0 %v701
        %v703 = vpop.xlane.xlu0 %702
        %v704 = vadd.f32 %v696, %v700
        %v705 = vadd.f32 %v697, %v703
        %vm706 = vcmask 7168
        %707 = vst.msk [vmem:[#allocation4] sm:$0xff] %vm706, %v704
        %708 = vst.msk [vmem:[#allocation4 + $0x8] sm:$0xff] %vm706, %v705
        %v709 = vpack.c.bf16 %v693, %v691
        %v712 = vunpack.c.l.b16 %v593
        %v713 = vunpack.c.l.b16 %v594
        %v714 = vpack.c.b16 %v713, %v712
        %v717 = vsel %vm663, %v709, 0
        %719 = vmatprep.subr.bf16.mxu0 0
        %720 = vmatpush1.bf16.msra.mxu0 %v714
        %721 = vmatprep.subr.bf16.mxu0 0
        %722 = vmatpush1.bf16.msra.mxu0 0
        %723 = vmatprep.subr.bf16.mxu0 0
        %724 = vmatpush1.bf16.msra.mxu0 0
        %725 = vmatprep.subr.bf16.mxu0 0
        %726 = vmatpush1.bf16.msra.mxu0 0
        %727 = vmatprep.subr.bf16.mxu0 0
        %728 = vmatpush1.bf16.msra.mxu0 0
        %729 = vmatprep.subr.bf16.mxu0 0
        %730 = vmatpush1.bf16.msra.mxu0 0
        %731 = vmatprep.subr.bf16.mxu0 0
        %732 = vmatpush1.bf16.msra.mxu0 0
        %733 = vmatprep.subr.bf16.mxu0 0
        %734 = vmatpush1.bf16.msra.mxu0 0
        %735 = vmatprep.subr.bf16.mxu0 0
        %736 = vmatpush1.bf16.msra.mxu0 0
        %737 = vmatprep.subr.bf16.mxu0 0
        %738 = vmatpush1.bf16.msra.mxu0 0
        %739 = vmatprep.subr.bf16.mxu0 0
        %740 = vmatpush1.bf16.msra.mxu0 0
        %741 = vmatprep.subr.bf16.mxu0 0
        %742 = vmatpush1.bf16.msra.mxu0 0
        %743 = vmatprep.subr.bf16.mxu0 0
        %744 = vmatpush1.bf16.msra.mxu0 0
        %745 = vmatprep.subr.bf16.mxu0 0
        %746 = vmatpush1.bf16.msra.mxu0 0
        %747 = vmatprep.subr.bf16.mxu0 0
        %748 = vmatpush1.bf16.msra.mxu0 0
        %749 = vmatprep.subr.bf16.mxu0 0
        %750 = vmatpush1.bf16.msra.mxu0 0
        %751 = vmatprep.mubr.bf16.mxu0 0
        %752 = vmatmul.mubr.bf16.gmra.mrb[0].mxu0 %v717
        %v753 = vpop.f32.mrb[0].mxu0
        %v754 = vadd.f32 0.0, %v753
        %v755 = vpop.f32.mrb[0].mxu0
        %v756 = vpop.f32.mrb[0].mxu0
        %v757 = vadd.f32 0.0, %v756
        %v758 = vpop.f32.mrb[0].mxu0
        %759 = vdwg.mxu0
        %v760 = vld [vmem:[#allocation5] sm:$0xff]
        %v761 = vld [vmem:[#allocation5 + $0x8] sm:$0xff]
        %763 = vset.pattern.permute.xlu0 0
        %764 = vperm.xlu0 %763, %v675
        %v765 = vpop.permute.xlu0 %764
        %768 = vset.pattern.permute.xlu0 0
        %769 = vperm.xlu0 %768, %v677
        %v770 = vpop.permute.xlu0 %769
        %v772 = vmul.f32 %v765, %v760
        %v773 = vmul.f32 %v770, %v761
        %v774 = vadd.f32 %v772, %v754
        %v775 = vadd.f32 %v773, %v757
        %776 = vst.msk [vmem:[#allocation5] sm:$0xff] %vm605, %v774
        %777 = vst.msk [vmem:[#allocation5 + $0x8] sm:$0xff] %vm605, %v775
        %778 = vst.msk [vmem:[#allocation3] sm:$0xff] %vm706, %v670
        %779 = vst.msk [vmem:[#allocation3 + $0x8] sm:$0xff] %vm706, %v671
        %781 = vrot.lane.b32.xlu0 %v599, 120
        %v782 = vpop.permute.xlu0 %781
        %783 = vrot.lane.b32.xlu0 %v604, 120
        %v784 = vpop.permute.xlu0 %783
        %v786 = vsel %vm605, %v782, 0
        %v789 = vsel %vm605, %v784, 0
        %791 = vmatprep.subr.bf16.mxu0 0
        %792 = vmatpush1.bf16.xpose.msra.mxu0 %v789
        %793 = vmatprep.subr.bf16.mxu0 0
        %794 = vmatpush1.bf16.xpose.msra.mxu0 0
        %795 = vmatprep.subr.bf16.mxu0 0
        %796 = vmatpush1.bf16.xpose.msra.mxu0 0
        %797 = vmatprep.subr.bf16.mxu0 0
        %798 = vmatpush1.bf16.xpose.msra.mxu0 0
        %799 = vmatprep.subr.bf16.mxu0 0
        %800 = vmatpush1.bf16.xpose.msra.mxu0 0
        %801 = vmatprep.subr.bf16.mxu0 0
        %802 = vmatpush1.bf16.xpose.msra.mxu0 0
        %803 = vmatprep.subr.bf16.mxu0 0
        %804 = vmatpush1.bf16.xpose.msra.mxu0 0
        %805 = vmatprep.subr.bf16.mxu0 0
        %806 = vmatpush1.bf16.xpose.msra.mxu0 0
        %807 = vmatprep.subr.bf16.mxu0 0
        %808 = vmatpush1.bf16.xpose.msra.mxu0 0
        %809 = vmatprep.subr.bf16.mxu0 0
        %810 = vmatpush1.bf16.xpose.msra.mxu0 0
        %811 = vmatprep.subr.bf16.mxu0 0
        %812 = vmatpush1.bf16.xpose.msra.mxu0 0
        %813 = vmatprep.subr.bf16.mxu0 0
        %814 = vmatpush1.bf16.xpose.msra.mxu0 0
        %815 = vmatprep.subr.bf16.mxu0 0
        %816 = vmatpush1.bf16.xpose.msra.mxu0 0
        %817 = vmatprep.subr.bf16.mxu0 0
        %818 = vmatpush1.bf16.xpose.msra.mxu0 0
        %819 = vmatprep.subr.bf16.mxu0 0
        %820 = vmatpush1.bf16.xpose.msra.mxu0 0
        %821 = vmatprep.subr.bf16.mxu0 0
        %822 = vmatpush1.bf16.xpose.msra.mxu0 0
        %823 = vmatprep.mubr.bf16.mxu0 0
        %824 = vmatmul.mubr.bf16.gmra.mrb[0].mxu0 %v786
        %v825 = vpop.f32.mrb[0].mxu0
        %v826 = vadd.f32 0.0, %v825
        %v827 = vpop.f32.mrb[0].mxu0
        %v828 = vpop.f32.mrb[0].mxu0
        %v829 = vadd.f32 0.0, %v828
        %v830 = vpop.f32.mrb[0].mxu0
        %831 = vdwg.mxu0
        %v832 = vsel %vm657, -1e+09, %v826
        %v833 = vsel %vm658, -1e+09, %v829
        %v834 = vld [vmem:[#allocation3] sm:$0xff]
        %v835 = vld [vmem:[#allocation3 + $0x8] sm:$0xff]
        %v836 = vsel %vm663, %v832, -inf
        %837 = vmax.xlane.f32.xlu0 %v836
        %v838 = vpop.xlane.xlu0 %837
        %v839 = vsel %vm663, %v833, -inf
        %840 = vmax.xlane.f32.xlu0 %v839
        %v841 = vpop.xlane.xlu0 %840
        %v842 = vmax.f32 %v834, %v838
        %v843 = vmax.f32 %v835, %v841
        %v844 = vsub.f32 %v834, %v842
        %v845 = vsub.f32 %v835, %v843
        %v846 = vmul.f32 %v844, 1.442695
        %v847 = vpow.pop %v846
        %v848 = vmul.f32 %v845, 1.442695
        %v849 = vpow.pop %v848
        %851 = vset.pattern.permute.xlu0 1
        %852 = vperm.xlu0 %851, %v842
        %v853 = vpop.permute.xlu0 %852
        %856 = vset.pattern.permute.xlu0 1
        %857 = vperm.xlu0 %856, %v843
        %v858 = vpop.permute.xlu0 %857
        %v860 = vsub.f32 %v832, %v853
        %v861 = vsub.f32 %v833, %v858
        %v862 = vmul.f32 %v860, 1.442695
        %v863 = vpow.pop %v862
        %v864 = vmul.f32 %v861, 1.442695
        %v865 = vpow.pop %v864
        %v866 = vld [vmem:[#allocation4] sm:$0xff]
        %v867 = vld [vmem:[#allocation4 + $0x8] sm:$0xff]
        %v868 = vmul.f32 %v847, %v866
        %v869 = vmul.f32 %v849, %v867
        %v870 = vsel %vm663, %v863, 0.0
        %871 = vadd.xlane.f32.xlu0 %v870
        %v872 = vpop.xlane.xlu0 %871
        %v873 = vsel %vm663, %v865, 0.0
        %874 = vadd.xlane.f32.xlu0 %v873
        %v875 = vpop.xlane.xlu0 %874
        %v876 = vadd.f32 %v868, %v872
        %v877 = vadd.f32 %v869, %v875
        %vm878 = vcmask 15368
        %879 = vst.msk [vmem:[#allocation4] sm:$0xff] %vm878, %v876
        %880 = vst.msk [vmem:[#allocation4 + $0x8] sm:$0xff] %vm878, %v877
        %v881 = vpack.c.bf16 %v865, %v863
        %882 = vrot.lane.b32.xlu0 %v714, 120
        %v883 = vpop.permute.xlu0 %882
        %v886 = vsel %vm663, %v881, 0
        %888 = vmatprep.subr.bf16.mxu0 0
        %889 = vmatpush1.bf16.msra.mxu0 %v883
        %890 = vmatprep.subr.bf16.mxu0 0
        %891 = vmatpush1.bf16.msra.mxu0 0
        %892 = vmatprep.subr.bf16.mxu0 0
        %893 = vmatpush1.bf16.msra.mxu0 0
        %894 = vmatprep.subr.bf16.mxu0 0
        %895 = vmatpush1.bf16.msra.mxu0 0
        %896 = vmatprep.subr.bf16.mxu0 0
        %897 = vmatpush1.bf16.msra.mxu0 0
        %898 = vmatprep.subr.bf16.mxu0 0
        %899 = vmatpush1.bf16.msra.mxu0 0
        %900 = vmatprep.subr.bf16.mxu0 0
        %901 = vmatpush1.bf16.msra.mxu0 0
        %902 = vmatprep.subr.bf16.mxu0 0
        %903 = vmatpush1.bf16.msra.mxu0 0
        %904 = vmatprep.subr.bf16.mxu0 0
        %905 = vmatpush1.bf16.msra.mxu0 0
        %906 = vmatprep.subr.bf16.mxu0 0
        %907 = vmatpush1.bf16.msra.mxu0 0
        %908 = vmatprep.subr.bf16.mxu0 0
        %909 = vmatpush1.bf16.msra.mxu0 0
        %910 = vmatprep.subr.bf16.mxu0 0
        %911 = vmatpush1.bf16.msra.mxu0 0
        %912 = vmatprep.subr.bf16.mxu0 0
        %913 = vmatpush1.bf16.msra.mxu0 0
        %914 = vmatprep.subr.bf16.mxu0 0
        %915 = vmatpush1.bf16.msra.mxu0 0
        %916 = vmatprep.subr.bf16.mxu0 0
        %917 = vmatpush1.bf16.msra.mxu0 0
        %918 = vmatprep.subr.bf16.mxu0 0
        %919 = vmatpush1.bf16.msra.mxu0 0
        %920 = vmatprep.mubr.bf16.mxu0 0
        %921 = vmatmul.mubr.bf16.gmra.mrb[0].mxu0 %v886
        %v922 = vpop.f32.mrb[0].mxu0
        %v923 = vadd.f32 0.0, %v922
        %v924 = vpop.f32.mrb[0].mxu0
        %v925 = vpop.f32.mrb[0].mxu0
        %v926 = vadd.f32 0.0, %v925
        %v927 = vpop.f32.mrb[0].mxu0
        %928 = vdwg.mxu0
        %v929 = vld [vmem:[#allocation5] sm:$0xff]
        %v930 = vld [vmem:[#allocation5 + $0x8] sm:$0xff]
        %932 = vset.pattern.permute.xlu0 1
        %933 = vperm.xlu0 %932, %v847
        %v934 = vpop.permute.xlu0 %933
        %937 = vset.pattern.permute.xlu0 1
        %938 = vperm.xlu0 %937, %v849
        %v939 = vpop.permute.xlu0 %938
        %v941 = vmul.f32 %v934, %v929
        %v942 = vmul.f32 %v939, %v930
        %945 = vrot.lane.b32.xlu0 %v923, 8
        %v946 = vpop.permute.xlu0 %945
        %947 = vrot.lane.b32.xlu0 %v926, 8
        %v948 = vpop.permute.xlu0 %947
        %v951 = vadd.f32 %v941, %v946
        %v952 = vadd.f32 %v942, %v948
        %vm953 = vcmask 130112
        %954 = vst.msk [vmem:[#allocation5] sm:$0xff] %vm953, %v951
        %955 = vst.msk [vmem:[#allocation5 + $0x8] sm:$0xff] %vm953, %v952
        %956 = vst.msk [vmem:[#allocation3] sm:$0xff] %vm878, %v842
        %957 = vst.msk [vmem:[#allocation3 + $0x8] sm:$0xff] %vm878, %v843
        %958 = vrot.lane.b32.xlu0 %v599, 112
        %v959 = vpop.permute.xlu0 %958
        %960 = vrot.lane.b32.xlu0 %v604, 112
        %v961 = vpop.permute.xlu0 %960
        %v963 = vsel %vm605, %v959, 0
        %v966 = vsel %vm605, %v961, 0
        %968 = vmatprep.subr.bf16.mxu0 0
        %969 = vmatpush1.bf16.xpose.msra.mxu0 %v966
        %970 = vmatprep.subr.bf16.mxu0 0
        %971 = vmatpush1.bf16.xpose.msra.mxu0 0
        %972 = vmatprep.subr.bf16.mxu0 0
        %973 = vmatpush1.bf16.xpose.msra.mxu0 0
        %974 = vmatprep.subr.bf16.mxu0 0
        %975 = vmatpush1.bf16.xpose.msra.mxu0 0
        %976 = vmatprep.subr.bf16.mxu0 0
        %977 = vmatpush1.bf16.xpose.msra.mxu0 0
        %978 = vmatprep.subr.bf16.mxu0 0
        %979 = vmatpush1.bf16.xpose.msra.mxu0 0
        %980 = vmatprep.subr.bf16.mxu0 0
        %981 = vmatpush1.bf16.xpose.msra.mxu0 0
        %982 = vmatprep.subr.bf16.mxu0 0
        %983 = vmatpush1.bf16.xpose.msra.mxu0 0
        %984 = vmatprep.subr.bf16.mxu0 0
        %985 = vmatpush1.bf16.xpose.msra.mxu0 0
        %986 = vmatprep.subr.bf16.mxu0 0
        %987 = vmatpush1.bf16.xpose.msra.mxu0 0
        %988 = vmatprep.subr.bf16.mxu0 0
        %989 = vmatpush1.bf16.xpose.msra.mxu0 0
        %990 = vmatprep.subr.bf16.mxu0 0
        %991 = vmatpush1.bf16.xpose.msra.mxu0 0
        %992 = vmatprep.subr.bf16.mxu0 0
        %993 = vmatpush1.bf16.xpose.msra.mxu0 0
        %994 = vmatprep.subr.bf16.mxu0 0
        %995 = vmatpush1.bf16.xpose.msra.mxu0 0
        %996 = vmatprep.subr.bf16.mxu0 0
        %997 = vmatpush1.bf16.xpose.msra.mxu0 0
        %998 = vmatprep.subr.bf16.mxu0 0
        %999 = vmatpush1.bf16.xpose.msra.mxu0 0
        %1000 = vmatprep.mubr.bf16.mxu0 0
        %1001 = vmatmul.mubr.bf16.gmra.mrb[0].mxu0 %v963
        %v1002 = vpop.f32.mrb[0].mxu0
        %v1003 = vadd.f32 0.0, %v1002
        %v1004 = vpop.f32.mrb[0].mxu0
        %v1005 = vpop.f32.mrb[0].mxu0
        %v1006 = vadd.f32 0.0, %v1005
        %v1007 = vpop.f32.mrb[0].mxu0
        %1008 = vdwg.mxu0
        %v1009 = vsel %vm657, -1e+09, %v1003
        %v1010 = vsel %vm658, -1e+09, %v1006
        %v1011 = vld [vmem:[#allocation3] sm:$0xff]
        %v1012 = vld [vmem:[#allocation3 + $0x8] sm:$0xff]
        %v1013 = vsel %vm663, %v1009, -inf
        %1014 = vmax.xlane.f32.xlu0 %v1013
        %v1015 = vpop.xlane.xlu0 %1014
        %v1016 = vsel %vm663, %v1010, -inf
        %1017 = vmax.xlane.f32.xlu0 %v1016
        %v1018 = vpop.xlane.xlu0 %1017
        %v1019 = vmax.f32 %v1011, %v1015
        %v1020 = vmax.f32 %v1012, %v1018
        %v1021 = vsub.f32 %v1011, %v1019
        %v1022 = vsub.f32 %v1012, %v1020
        %v1023 = vmul.f32 %v1021, 1.442695
        %v1024 = vpow.pop %v1023
        %v1025 = vmul.f32 %v1022, 1.442695
        %v1026 = vpow.pop %v1025
        %1028 = vset.pattern.permute.xlu0 2
        %1029 = vperm.xlu0 %1028, %v1019
        %v1030 = vpop.permute.xlu0 %1029
        %1033 = vset.pattern.permute.xlu0 2
        %1034 = vperm.xlu0 %1033, %v1020
        %v1035 = vpop.permute.xlu0 %1034
        %v1037 = vsub.f32 %v1009, %v1030
        %v1038 = vsub.f32 %v1010, %v1035
        %v1039 = vmul.f32 %v1037, 1.442695
        %v1040 = vpow.pop %v1039
        %v1041 = vmul.f32 %v1038, 1.442695
        %v1042 = vpow.pop %v1041
        %v1043 = vld [vmem:[#allocation4] sm:$0xff]
        %v1044 = vld [vmem:[#allocation4 + $0x8] sm:$0xff]
        %v1045 = vmul.f32 %v1024, %v1043
        %v1046 = vmul.f32 %v1026, %v1044
        %v1047 = vsel %vm663, %v1040, 0.0
        %1048 = vadd.xlane.f32.xlu0 %v1047
        %v1049 = vpop.xlane.xlu0 %1048
        %v1050 = vsel %vm663, %v1042, 0.0
        %1051 = vadd.xlane.f32.xlu0 %v1050
        %v1052 = vpop.xlane.xlu0 %1051
        %v1053 = vadd.f32 %v1045, %v1049
        %v1054 = vadd.f32 %v1046, %v1052
        %vm1055 = vcmask 23568
        %1056 = vst.msk [vmem:[#allocation4] sm:$0xff] %vm1055, %v1053
        %1057 = vst.msk [vmem:[#allocation4 + $0x8] sm:$0xff] %vm1055, %v1054
        %v1058 = vpack.c.bf16 %v1042, %v1040
        %1059 = vrot.lane.b32.xlu0 %v714, 112
        %v1060 = vpop.permute.xlu0 %1059
        %v1063 = vsel %vm663, %v1058, 0
        %1065 = vmatprep.subr.bf16.mxu0 0
        %1066 = vmatpush1.bf16.msra.mxu0 %v1060
        %1067 = vmatprep.subr.bf16.mxu0 0
        %1068 = vmatpush1.bf16.msra.mxu0 0
        %1069 = vmatprep.subr.bf16.mxu0 0
        %1070 = vmatpush1.bf16.msra.mxu0 0
        %1071 = vmatprep.subr.bf16.mxu0 0
        %1072 = vmatpush1.bf16.msra.mxu0 0
        %1073 = vmatprep.subr.bf16.mxu0 0
        %1074 = vmatpush1.bf16.msra.mxu0 0
        %1075 = vmatprep.subr.bf16.mxu0 0
        %1076 = vmatpush1.bf16.msra.mxu0 0
        %1077 = vmatprep.subr.bf16.mxu0 0
        %1078 = vmatpush1.bf16.msra.mxu0 0
        %1079 = vmatprep.subr.bf16.mxu0 0
        %1080 = vmatpush1.bf16.msra.mxu0 0
        %1081 = vmatprep.subr.bf16.mxu0 0
        %1082 = vmatpush1.bf16.msra.mxu0 0
        %1083 = vmatprep.subr.bf16.mxu0 0
        %1084 = vmatpush1.bf16.msra.mxu0 0
        %1085 = vmatprep.subr.bf16.mxu0 0
        %1086 = vmatpush1.bf16.msra.mxu0 0
        %1087 = vmatprep.subr.bf16.mxu0 0
        %1088 = vmatpush1.bf16.msra.mxu0 0
        %1089 = vmatprep.subr.bf16.mxu0 0
        %1090 = vmatpush1.bf16.msra.mxu0 0
        %1091 = vmatprep.subr.bf16.mxu0 0
        %1092 = vmatpush1.bf16.msra.mxu0 0
        %1093 = vmatprep.subr.bf16.mxu0 0
        %1094 = vmatpush1.bf16.msra.mxu0 0
        %1095 = vmatprep.subr.bf16.mxu0 0
        %1096 = vmatpush1.bf16.msra.mxu0 0
        %1097 = vmatprep.mubr.bf16.mxu0 0
        %1098 = vmatmul.mubr.bf16.gmra.mrb[0].mxu0 %v1063
        %v1099 = vpop.f32.mrb[0].mxu0
        %v1100 = vadd.f32 0.0, %v1099
        %v1101 = vpop.f32.mrb[0].mxu0
        %v1102 = vpop.f32.mrb[0].mxu0
        %v1103 = vadd.f32 0.0, %v1102
        %v1104 = vpop.f32.mrb[0].mxu0
        %1105 = vdwg.mxu0
        %v1106 = vld [vmem:[#allocation5] sm:$0xff]
        %v1107 = vld [vmem:[#allocation5 + $0x8] sm:$0xff]
        %1109 = vset.pattern.permute.xlu0 2
        %1110 = vperm.xlu0 %1109, %v1024
        %v1111 = vpop.permute.xlu0 %1110
        %1114 = vset.pattern.permute.xlu0 2
        %1115 = vperm.xlu0 %1114, %v1026
        %v1116 = vpop.permute.xlu0 %1115
        %v1118 = vmul.f32 %v1111, %v1106
        %v1119 = vmul.f32 %v1116, %v1107
        %1122 = vrot.lane.b32.xlu0 %v1100, 16
        %v1123 = vpop.permute.xlu0 %1122
        %1124 = vrot.lane.b32.xlu0 %v1103, 16
        %v1125 = vpop.permute.xlu0 %1124
        %v1128 = vadd.f32 %v1118, %v1123
        %v1129 = vadd.f32 %v1119, %v1125
        %vm1130 = vcmask 195712
        %1131 = vst.msk [vmem:[#allocation5] sm:$0xff] %vm1130, %v1128
        %1132 = vst.msk [vmem:[#allocation5 + $0x8] sm:$0xff] %vm1130, %v1129
        %1133 = vst.msk [vmem:[#allocation3] sm:$0xff] %vm1055, %v1019
        %1134 = vst.msk [vmem:[#allocation3 + $0x8] sm:$0xff] %vm1055, %v1020
        %1135 = vrot.lane.b32.xlu0 %v599, 104
        %v1136 = vpop.permute.xlu0 %1135
        %1137 = vrot.lane.b32.xlu0 %v604, 104
        %v1138 = vpop.permute.xlu0 %1137
        %v1140 = vsel %vm605, %v1136, 0
        %v1143 = vsel %vm605, %v1138, 0
        %1145 = vmatprep.subr.bf16.mxu0 0
        %1146 = vmatpush1.bf16.xpose.msra.mxu0 %v1143
        %1147 = vmatprep.subr.bf16.mxu0 0
        %1148 = vmatpush1.bf16.xpose.msra.mxu0 0
        %1149 = vmatprep.subr.bf16.mxu0 0
        %1150 = vmatpush1.bf16.xpose.msra.mxu0 0
        %1151 = vmatprep.subr.bf16.mxu0 0
        %1152 = vmatpush1.bf16.xpose.msra.mxu0 0
        %1153 = vmatprep.subr.bf16.mxu0 0
        %1154 = vmatpush1.bf16.xpose.msra.mxu0 0
        %1155 = vmatprep.subr.bf16.mxu0 0
        %1156 = vmatpush1.bf16.xpose.msra.mxu0 0
        %1157 = vmatprep.subr.bf16.mxu0 0
        %1158 = vmatpush1.bf16.xpose.msra.mxu0 0
        %1159 = vmatprep.subr.bf16.mxu0 0
        %1160 = vmatpush1.bf16.xpose.msra.mxu0 0
        %1161 = vmatprep.subr.bf16.mxu0 0
        %1162 = vmatpush1.bf16.xpose.msra.mxu0 0
        %1163 = vmatprep.subr.bf16.mxu0 0
        %1164 = vmatpush1.bf16.xpose.msra.mxu0 0
        %1165 = vmatprep.subr.bf16.mxu0 0
        %1166 = vmatpush1.bf16.xpose.msra.mxu0 0
        %1167 = vmatprep.subr.bf16.mxu0 0
        %1168 = vmatpush1.bf16.xpose.msra.mxu0 0
        %1169 = vmatprep.subr.bf16.mxu0 0
        %1170 = vmatpush1.bf16.xpose.msra.mxu0 0
        %1171 = vmatprep.subr.bf16.mxu0 0
        %1172 = vmatpush1.bf16.xpose.msra.mxu0 0
        %1173 = vmatprep.subr.bf16.mxu0 0
        %1174 = vmatpush1.bf16.xpose.msra.mxu0 0
        %1175 = vmatprep.subr.bf16.mxu0 0
        %1176 = vmatpush1.bf16.xpose.msra.mxu0 0
        %1177 = vmatprep.mubr.bf16.mxu0 0
        %1178 = vmatmul.mubr.bf16.gmra.mrb[0].mxu0 %v1140
        %v1179 = vpop.f32.mrb[0].mxu0
        %v1180 = vadd.f32 0.0, %v1179
        %v1181 = vpop.f32.mrb[0].mxu0
        %v1182 = vpop.f32.mrb[0].mxu0
        %v1183 = vadd.f32 0.0, %v1182
        %v1184 = vpop.f32.mrb[0].mxu0
        %1185 = vdwg.mxu0
        %v1186 = vsel %vm657, -1e+09, %v1180
        %v1187 = vsel %vm658, -1e+09, %v1183
        %v1188 = vld [vmem:[#allocation3] sm:$0xff]
        %v1189 = vld [vmem:[#allocation3 + $0x8] sm:$0xff]
        %v1190 = vsel %vm663, %v1186, -inf
        %1191 = vmax.xlane.f32.xlu0 %v1190
        %v1192 = vpop.xlane.xlu0 %1191
        %v1193 = vsel %vm663, %v1187, -inf
        %1194 = vmax.xlane.f32.xlu0 %v1193
        %v1195 = vpop.xlane.xlu0 %1194
        %v1196 = vmax.f32 %v1188, %v1192
        %v1197 = vmax.f32 %v1189, %v1195
        %v1198 = vsub.f32 %v1188, %v1196
        %v1199 = vsub.f32 %v1189, %v1197
        %v1200 = vmul.f32 %v1198, 1.442695
        %v1201 = vpow.pop %v1200
        %v1202 = vmul.f32 %v1199, 1.442695
        %v1203 = vpow.pop %v1202
        %1205 = vset.pattern.permute.xlu0 3
        %1206 = vperm.xlu0 %1205, %v1196
        %v1207 = vpop.permute.xlu0 %1206
        %1210 = vset.pattern.permute.xlu0 3
        %1211 = vperm.xlu0 %1210, %v1197
        %v1212 = vpop.permute.xlu0 %1211
        %v1214 = vsub.f32 %v1186, %v1207
        %v1215 = vsub.f32 %v1187, %v1212
        %v1216 = vmul.f32 %v1214, 1.442695
        %v1217 = vpow.pop %v1216
        %v1218 = vmul.f32 %v1215, 1.442695
        %v1219 = vpow.pop %v1218
        %v1220 = vld [vmem:[#allocation4] sm:$0xff]
        %v1221 = vld [vmem:[#allocation4 + $0x8] sm:$0xff]
        %v1222 = vmul.f32 %v1201, %v1220
        %v1223 = vmul.f32 %v1203, %v1221
        %v1224 = vsel %vm663, %v1217, 0.0
        %1225 = vadd.xlane.f32.xlu0 %v1224
        %v1226 = vpop.xlane.xlu0 %1225
        %v1227 = vsel %vm663, %v1219, 0.0
        %1228 = vadd.xlane.f32.xlu0 %v1227
        %v1229 = vpop.xlane.xlu0 %1228
        %v1230 = vadd.f32 %v1222, %v1226
        %v1231 = vadd.f32 %v1223, %v1229
        %vm1232 = vcmask 31768
        %1233 = vst.msk [vmem:[#allocation4] sm:$0xff] %vm1232, %v1230
        %1234 = vst.msk [vmem:[#allocation4 + $0x8] sm:$0xff] %vm1232, %v1231
        %v1235 = vpack.c.bf16 %v1219, %v1217
        %1236 = vrot.lane.b32.xlu0 %v714, 104
        %v1237 = vpop.permute.xlu0 %1236
        %v1240 = vsel %vm663, %v1235, 0
        %1242 = vmatprep.subr.bf16.mxu0 0
        %1243 = vmatpush1.bf16.msra.mxu0 %v1237
        %1244 = vmatprep.subr.bf16.mxu0 0
        %1245 = vmatpush1.bf16.msra.mxu0 0
        %1246 = vmatprep.subr.bf16.mxu0 0
        %1247 = vmatpush1.bf16.msra.mxu0 0
        %1248 = vmatprep.subr.bf16.mxu0 0
        %1249 = vmatpush1.bf16.msra.mxu0 0
        %1250 = vmatprep.subr.bf16.mxu0 0
        %1251 = vmatpush1.bf16.msra.mxu0 0
        %1252 = vmatprep.subr.bf16.mxu0 0
        %1253 = vmatpush1.bf16.msra.mxu0 0
        %1254 = vmatprep.subr.bf16.mxu0 0
        %1255 = vmatpush1.bf16.msra.mxu0 0
        %1256 = vmatprep.subr.bf16.mxu0 0
        %1257 = vmatpush1.bf16.msra.mxu0 0
        %1258 = vmatprep.subr.bf16.mxu0 0
        %1259 = vmatpush1.bf16.msra.mxu0 0
        %1260 = vmatprep.subr.bf16.mxu0 0
        %1261 = vmatpush1.bf16.msra.mxu0 0
        %1262 = vmatprep.subr.bf16.mxu0 0
        %1263 = vmatpush1.bf16.msra.mxu0 0
        %1264 = vmatprep.subr.bf16.mxu0 0
        %1265 = vmatpush1.bf16.msra.mxu0 0
        %1266 = vmatprep.subr.bf16.mxu0 0
        %1267 = vmatpush1.bf16.msra.mxu0 0
        %1268 = vmatprep.subr.bf16.mxu0 0
        %1269 = vmatpush1.bf16.msra.mxu0 0
        %1270 = vmatprep.subr.bf16.mxu0 0
        %1271 = vmatpush1.bf16.msra.mxu0 0
        %1272 = vmatprep.subr.bf16.mxu0 0
        %1273 = vmatpush1.bf16.msra.mxu0 0
        %1274 = vmatprep.mubr.bf16.mxu0 0
        %1275 = vmatmul.mubr.bf16.gmra.mrb[0].mxu0 %v1240
        %v1276 = vpop.f32.mrb[0].mxu0
        %v1277 = vadd.f32 0.0, %v1276
        %v1278 = vpop.f32.mrb[0].mxu0
        %v1279 = vpop.f32.mrb[0].mxu0
        %v1280 = vadd.f32 0.0, %v1279
        %v1281 = vpop.f32.mrb[0].mxu0
        %1282 = vdwg.mxu0
        %v1283 = vld [vmem:[#allocation5] sm:$0xff]
        %v1284 = vld [vmem:[#allocation5 + $0x8] sm:$0xff]
        %1286 = vset.pattern.permute.xlu0 3
        %1287 = vperm.xlu0 %1286, %v1201
        %v1288 = vpop.permute.xlu0 %1287
        %1291 = vset.pattern.permute.xlu0 3
        %1292 = vperm.xlu0 %1291, %v1203
        %v1293 = vpop.permute.xlu0 %1292
        %v1295 = vmul.f32 %v1288, %v1283
        %v1296 = vmul.f32 %v1293, %v1284
        %1299 = vrot.lane.b32.xlu0 %v1277, 24
        %v1300 = vpop.permute.xlu0 %1299
        %1301 = vrot.lane.b32.xlu0 %v1280, 24
        %v1302 = vpop.permute.xlu0 %1301
        %v1305 = vadd.f32 %v1295, %v1300
        %v1306 = vadd.f32 %v1296, %v1302
        %vm1307 = vcmask 261312
        %1308 = vst.msk [vmem:[#allocation5] sm:$0xff] %vm1307, %v1305
        %1309 = vst.msk [vmem:[#allocation5 + $0x8] sm:$0xff] %vm1307, %v1306
        %1310 = vst.msk [vmem:[#allocation3] sm:$0xff] %vm1232, %v1196
        %1311 = vst.msk [vmem:[#allocation3 + $0x8] sm:$0xff] %vm1232, %v1197
        // Predicated region
        $region77: #{tpu_custom_call.1} parent=51 // pred_check
          %p1312 = pneg %p503
        $region78: #{tpu_custom_call.1} parent=51 // pred_check_branch
          %1314 = sbr.rel (%p1312) target = $region80
        $region79: #{tpu_custom_call.1} parent=51 // pred_region
          %v1315 = vld [vmem:[#allocation4] sm:$0xff]
          %v1316 = vld [vmem:[#allocation4 + $0x8] sm:$0xff]
          %v1317 = vrcp.pop %v1315
          %v1318 = vrcp.pop %v1316
          %v1319 = vld [vmem:[#allocation5] sm:$0xff]
          %v1320 = vld [vmem:[#allocation5 + $0x8] sm:$0xff]
          %1322 = vset.pattern.permute.xlu0 0
          %1323 = vperm.xlu0 %1322, %v1317
          %v1324 = vpop.permute.xlu0 %1323
          %1327 = vset.pattern.permute.xlu0 0
          %1328 = vperm.xlu0 %1327, %v1318
          %v1329 = vpop.permute.xlu0 %1328
          %v1331 = vmul.f32 %v1319, %v1324
          %v1332 = vmul.f32 %v1320, %v1329
          %1333 = vst.msk [vmem:[#allocation5] sm:$0xff] %vm605, %v1331
          %1334 = vst.msk [vmem:[#allocation5 + $0x8] sm:$0xff] %vm605, %v1332
          %v1335 = vld [vmem:[#allocation5] sm:$0xff]
          %v1336 = vld [vmem:[#allocation5 + $0x8] sm:$0xff]
          %1337 = vset.pattern.permute.xlu0 1
          %1338 = vperm.xlu0 %1337, %v1317
          %v1339 = vpop.permute.xlu0 %1338
          %1341 = vset.pattern.permute.xlu0 1
          %1342 = vperm.xlu0 %1341, %v1318
          %v1343 = vpop.permute.xlu0 %1342
          %v1345 = vmul.f32 %v1335, %v1339
          %v1346 = vmul.f32 %v1336, %v1343
          %1347 = vst.msk [vmem:[#allocation5] sm:$0xff] %vm953, %v1345
          %1348 = vst.msk [vmem:[#allocation5 + $0x8] sm:$0xff] %vm953, %v1346
          %v1349 = vld [vmem:[#allocation5] sm:$0xff]
          %v1350 = vld [vmem:[#allocation5 + $0x8] sm:$0xff]
          %1351 = vset.pattern.permute.xlu0 2
          %1352 = vperm.xlu0 %1351, %v1317
          %v1353 = vpop.permute.xlu0 %1352
          %1355 = vset.pattern.permute.xlu0 2
          %1356 = vperm.xlu0 %1355, %v1318
          %v1357 = vpop.permute.xlu0 %1356
          %v1359 = vmul.f32 %v1349, %v1353
          %v1360 = vmul.f32 %v1350, %v1357
          %1361 = vst.msk [vmem:[#allocation5] sm:$0xff] %vm1130, %v1359
          %1362 = vst.msk [vmem:[#allocation5 + $0x8] sm:$0xff] %vm1130, %v1360
          %v1363 = vld [vmem:[#allocation5] sm:$0xff]
          %v1364 = vld [vmem:[#allocation5 + $0x8] sm:$0xff]
          %1365 = vset.pattern.permute.xlu0 3
          %1366 = vperm.xlu0 %1365, %v1317
          %v1367 = vpop.permute.xlu0 %1366
          %1369 = vset.pattern.permute.xlu0 3
          %1370 = vperm.xlu0 %1369, %v1318
          %v1371 = vpop.permute.xlu0 %1370
          %v1373 = vmul.f32 %v1363, %v1367
          %v1374 = vmul.f32 %v1364, %v1371
          %1375 = vst.msk [vmem:[#allocation5] sm:$0xff] %vm1307, %v1373
          %1376 = vst.msk [vmem:[#allocation5 + $0x8] sm:$0xff] %vm1307, %v1374
          %v1377 = vld [vmem:[#allocation5] sm:$0xff]
          %v1378 = vld [vmem:[#allocation5 + $0x8] sm:$0xff]
          %v1379 = vpack.c.bf16 %v1378, %v1377
          %v1380 = vld [vmem:[%s6] sm:$0xf]
          %v1381 = vld [vmem:[%s6 + $0x4] sm:$0xf]
          %v1382 = vld [vmem:[%s6 + $0x8] sm:$0xf]
          %v1383 = vld [vmem:[%s6 + $0xc] sm:$0xf]
          %v1384 = vld [vmem:[%s7] sm:$0x1]
          %v1386 = vlaneseq
          %v1387 = vshrl.u32 %v1386, 7
          %v1388 = vsub.s32 0, %v1387
          %v1389 = vrot.slane %v1384, %v1388
          %v1395 = vunpack.c.l.b16 %v1380
          %v1396 = vunpack.c.l.b16 %v1381
          %v1397 = vunpack.c.l.b16 %v1382
          %v1398 = vunpack.c.l.b16 %v1383
          %v1399 = vpack.c.b16 %v1396, %v1395
          %v1400 = vpack.c.b16 %v1398, %v1397
          %vm1403 = vcmask 261120
          %v1405 = vsel %vm1403, %v1379, 0
          %1407 = vmatprep.subr.bf16.mxu0 0
          %1408 = vmatpush1.bf16.msra.mxu0 %v1399
          %1409 = vmatprep.subr.bf16.mxu0 0
          %1410 = vmatpush1.bf16.msra.mxu0 %v1400
          %1411 = vmatprep.subr.bf16.mxu0 0
          %1412 = vmatpush1.bf16.msra.mxu0 0
          %1413 = vmatprep.subr.bf16.mxu0 0
          %1414 = vmatpush1.bf16.msra.mxu0 0
          %1415 = vmatprep.subr.bf16.mxu0 0
          %1416 = vmatpush1.bf16.msra.mxu0 0
          %1417 = vmatprep.subr.bf16.mxu0 0
          %1418 = vmatpush1.bf16.msra.mxu0 0
          %1419 = vmatprep.subr.bf16.mxu0 0
          %1420 = vmatpush1.bf16.msra.mxu0 0
          %1421 = vmatprep.subr.bf16.mxu0 0
          %1422 = vmatpush1.bf16.msra.mxu0 0
          %1423 = vmatprep.subr.bf16.mxu0 0
          %1424 = vmatpush1.bf16.msra.mxu0 0
          %1425 = vmatprep.subr.bf16.mxu0 0
          %1426 = vmatpush1.bf16.msra.mxu0 0
          %1427 = vmatprep.subr.bf16.mxu0 0
          %1428 = vmatpush1.bf16.msra.mxu0 0
          %1429 = vmatprep.subr.bf16.mxu0 0
          %1430 = vmatpush1.bf16.msra.mxu0 0
          %1431 = vmatprep.subr.bf16.mxu0 0
          %1432 = vmatpush1.bf16.msra.mxu0 0
          %1433 = vmatprep.subr.bf16.mxu0 0
          %1434 = vmatpush1.bf16.msra.mxu0 0
          %1435 = vmatprep.subr.bf16.mxu0 0
          %1436 = vmatpush1.bf16.msra.mxu0 0
          %1437 = vmatprep.subr.bf16.mxu0 0
          %1438 = vmatpush1.bf16.msra.mxu0 0
          %1439 = vmatprep.mubr.bf16.mxu0 0
          %1440 = vmatmul.mubr.bf16.gmra.mrb[0].mxu0 %v1405
          %v1441 = vpop.f32.mrb[0].mxu0
          %v1442 = vadd.f32 %v1389, %v1441
          %v1443 = vpop.f32.mrb[0].mxu0
          %v1444 = vpop.f32.mrb[0].mxu0
          %v1445 = vadd.f32 %v1389, %v1444
          %v1446 = vpop.f32.mrb[0].mxu0
          %1447 = vdwg.mxu0
          %1448 = vst.msk [vmem:[%s494] sm:$0xff] %vm1403, %v1442
          %1449 = vst.msk [vmem:[%s494 + $0x8] sm:$0xff] %vm1403, %v1445
        $region80: #{tpu_custom_call.1} parent=51 // pred_fallthru
          _
        %s1450 = sand.u32 %s258, 1
        %s1451 = scalar_lea.sflag [#allocation8], %s1450
        %s1452 = sand.u32 %s258, 1
        %s1453 = smul.addr %s1452, 16
        %s1454 = scalar_lea.vmem [#allocation15], %s1453
        // Predicated region
        $region81: #{tpu_custom_call.1} parent=51 // pred_check
          %p1455 = pneg %p268
        $region82: #{tpu_custom_call.1} parent=51 // pred_check_branch
          %1457 = sbr.rel (%p1455) target = $region84
        $region83: #{tpu_custom_call.1} parent=51 // pred_region
          %s1458 = smul.u32 2, %s37
          %s1460 = ssub.s32 256, 256
          %1461 = vsyncadd %s1451, %s1460
          %s1462 = smul.addr %s36, 2
          %s1463 = sadd.s32 %s1458, %s1462
          %s1464 = smul.addr %s1463, 128
          %s1465 = scalar_lea.hbm %s8, %s1464
          %s1466 = sshll.u32 %s1454, 4
          %s1467 = int_to_ptr.vmem [resolvable:$true] %s1466
          %1472 = dma.vmem_to_hbm [thread:$0]  %s1467, 256, %s1465, %s1451, 128, 128, 8
        $region84: #{tpu_custom_call.1} parent=51 // pred_fallthru
          _
      $region52: #{tpu_custom_call.1} parent=5 // pred_fallthru
        _
      %p1473 = scmp.le.s32.totalorder 2, %s26
      // Predicated region
      $region85: #{tpu_custom_call.1} parent=5 // pred_check
        %p1474 = pneg %p1473
      $region86: #{tpu_custom_call.1} parent=5 // pred_check_branch
        %1476 = sbr.rel (%p1474) target = $region88
      $region87: #{tpu_custom_call.1} parent=5 // pred_region
        %s1477 = ssub.s32 %s26, 2
        // Predicated region
        $region89: #{tpu_custom_call.1} parent=87 // pred_check
          %p1478 = pneg %p274
        $region90: #{tpu_custom_call.1} parent=87 // pred_check_branch
          %1480 = sbr.rel (%p1478) target = $region92
        $region91: #{tpu_custom_call.1} parent=87 // pred_region
          %s1481 = sand.u32 %s259, 1
          %s1482 = scalar_lea.sflag [#allocation8], %s1481
          %s1483 = sand.u32 %s259, 1
          %s1484 = smul.addr %s1483, 16
          %s1485 = scalar_lea.vmem [#allocation15], %s1484
          %1486 = dma.done %s1482, 256
        $region92: #{tpu_custom_call.1} parent=87 // pred_fallthru
          _
      $region88: #{tpu_custom_call.1} parent=5 // pred_fallthru
        _
    $region6: #{tpu_custom_call.1} parent=1 // loop_footer
      %s30 = sadd.s32 1, %s26
    $region7: #{tpu_custom_call.1} parent=1 // loop_footer_branch
      %25 = sbr.rel target = $region3
    $region8: #{tpu_custom_call.1} parent=1 // loop_exit
      _
    %1487 = vsyncpa [#allocation7], 1
    %s1488 = scalar_lea.sflag [#allocation7], 1
    %1489 = vsyncpa %s1488, 1
    %1490 = vsyncpa [#allocation10], 1
    %s1491 = scalar_lea.sflag [#allocation10], 1
    %1492 = vsyncpa %s1491, 1
    %1493 = vsyncpa [#allocation13], 1
    %s1494 = scalar_lea.sflag [#allocation13], 1
    %1495 = vsyncpa %s1494, 1
    %1496 = vsyncpa [#allocation8], 1
    %s1497 = scalar_lea.sflag [#allocation8], 1
    %1498 = vsyncpa %s1497, 1

</llo_original>
